<compile_context>
chip_gen: v6e
topology: v6e:2x2x1
jax: 0.10.0
libtpu: 0.0.40
codegen_flags: <defaults>
</compile_context>

<pallas_src>
import functools

import jax
import jax.numpy as jnp
from jax.experimental import pallas as pl
from jax.experimental.pallas import tpu as pltpu


def _round_up(x, m):
    return (x + m - 1) // m * m


# --------------------------------------------------------------------------- #
# Fused conv kernel: 9-tap accumulated matmul + bias + LeakyReLU (one image)
# --------------------------------------------------------------------------- #
def _conv3x3_s2_kernel(x_ref, w_ref, b_ref, o_ref, *, taps, mo, c, slope):
    """x_ref: (1, Ls_pad, 4C) bf16 space-to-depth rows of one image.
       w_ref: (9, C, t_oc) bf16;  b_ref: (1, t_oc) f32;  o_ref: (1, Mo, t_oc) bf16."""
    acc = None
    for t, (off, c0) in enumerate(taps):
        a = x_ref[0, off:off + mo, c0:c0 + c]              # (Mo, C) static slice
        p = jnp.dot(a, w_ref[t], preferred_element_type=jnp.float32)
        acc = p if acc is None else acc + p
    acc = acc + b_ref[...]                                  # fp32 epilogue
    acc = jnp.where(acc >= 0.0, acc, slope * acc)
    o_ref[0] = acc.astype(o_ref.dtype)


def conv2d_s2_p1_lrelu(x_nhwc, w_k, b_k, oc, slope):
    """3x3 / stride-2 / pad-1 conv + LeakyReLU in NHWC with fused in-kernel im2col.

    x_nhwc: (N, H, W, C) bf16; w_k: (9, C, OC_pad) bf16 (prepared); b_k: (1, OC_pad) f32.
    Returns (N, OH, OW, OC) bf16.
    """
    n, h, wd, c = x_nhwc.shape
    oh = (h - 1) // 2 + 1
    ow = (wd - 1) // 2 + 1
    oc_pad = w_k.shape[-1]
    c4 = 4 * c

    # Space-to-depth: fold the stride-2 row/col parities onto the channel (lane)
    # dim so every conv tap is a contiguous flat-row slice inside the kernel.
    ht, wt = 2 * (oh + 1), 2 * (ow + 1)
    xp = jnp.pad(x_nhwc.astype(jnp.bfloat16),
                 ((0, 0), (1, ht - h - 1), (1, wt - wd - 1), (0, 0)))
    xs = xp.reshape(n, oh + 1, 2, ow + 1, 2, c)
    xs = xs.transpose(0, 1, 3, 2, 4, 5).reshape(n, (oh + 1) * (ow + 1), c4)
    # The (dh=1, dw=1) taps read one row past the end on the discarded garbage
    # column; zero-pad flat rows up and round to a sublane multiple.
    ls_pad = _round_up((oh + 1) * (ow + 1) + 1, 8)
    xs = jnp.pad(xs, ((0, 0), (0, ls_pad - xs.shape[1]), (0, 0)))

    mo = oh * (ow + 1)          # rows computed per image (includes 1 garbage col)
    taps = []
    for kh in range(3):
        for kw in range(3):
            off = (kh // 2) * (ow + 1) + (kw // 2)          # flat row offset
            c0 = ((kh % 2) * 2 + (kw % 2)) * c              # phase channel offset
            taps.append((off, c0))

    t_oc = 256 if oc_pad % 256 == 0 else 128                # oc_pad is a mult of 128
    kernel = functools.partial(_conv3x3_s2_kernel, taps=tuple(taps), mo=mo, c=c,
                               slope=slope)
    cost = pl.CostEstimate(
        flops=2 * n * mo * 9 * c * oc_pad,
        transcendentals=0,
        bytes_accessed=(xs.size * 2 + w_k.size * 2 + b_k.size * 4
                        + n * mo * oc_pad * 2),
    )
    out = pl.pallas_call(
        kernel,
        out_shape=jax.ShapeDtypeStruct((n, mo, oc_pad), jnp.bfloat16),
        grid_spec=pltpu.PrefetchScalarGridSpec(
            num_scalar_prefetch=0,
            grid=(n, oc_pad // t_oc),
            in_specs=[
                pl.BlockSpec((1, ls_pad, c4), lambda i, j: (i, 0, 0)),
                pl.BlockSpec((9, c, t_oc), lambda i, j: (0, 0, j)),
                pl.BlockSpec((1, t_oc), lambda i, j: (0, j)),
            ],
            out_specs=pl.BlockSpec((1, mo, t_oc), lambda i, j: (i, 0, j)),
        ),
        compiler_params=pltpu.CompilerParams(
            dimension_semantics=("parallel", "parallel"),
            # Below v7x's 64 MiB physical VMEM; plenty of headroom on v5e/v6e.
            vmem_limit_bytes=48 * 1024 * 1024,
        ),
        cost_estimate=cost,
    )(xs, w_k, b_k)

    # Drop the garbage column and lane-padded channels (fuses into the next
    # layer's space-to-depth prep under jit); stays NHWC.
    out = out.reshape(n, oh, ow + 1, oc_pad)[:, :, :ow, :oc]
    return out


# --------------------------------------------------------------------------- #
# Final Linear(n_out_features, 1) with lane-padded output column
# --------------------------------------------------------------------------- #
def _linear_kernel(a_ref, w_ref, b_ref, o_ref):
    o_ref[...] = (jnp.dot(a_ref[...], w_ref[...], preferred_element_type=jnp.float32)
                  + b_ref[...])


def final_linear(x_flat, w_pad, b_pad):
    """x_flat: (M, K) bf16; w_pad: (K, 128) bf16; b_pad: (1, 128) f32 -> (M, 1) f32."""
    m, k = x_flat.shape
    n_pad = w_pad.shape[1]
    # TODO(synk): tile M/K for large batches; at DCGAN sizes this op is negligible.
    out = pl.pallas_call(
        _linear_kernel,
        out_shape=jax.ShapeDtypeStruct((m, n_pad), jnp.float32),
        grid_spec=pltpu.PrefetchScalarGridSpec(
            num_scalar_prefetch=0,
            grid=(1,),
            in_specs=[
                pl.BlockSpec((m, k), lambda i: (0, 0)),
                pl.BlockSpec((k, n_pad), lambda i: (0, 0)),
                pl.BlockSpec((1, n_pad), lambda i: (0, 0)),
            ],
            out_specs=pl.BlockSpec((m, n_pad), lambda i: (0, 0)),
        ),
        compiler_params=pltpu.CompilerParams(
            dimension_semantics=("arbitrary",),
            vmem_limit_bytes=48 * 1024 * 1024,
        ),
    )(x_flat.astype(jnp.bfloat16), w_pad, b_pad)
    return out[:, :1]


# --------------------------------------------------------------------------- #
# Parameter init (PyTorch layout), one-time kernel-layout preparation, forward
# --------------------------------------------------------------------------- #
def init_params(key, img_size, n_channels, n_filters, n_layers, kernel_size=3):
    params = {"convs": []}
    c_in, c_out = n_channels, n_filters
    tmp = img_size
    for _ in range(n_layers):
        key, k1, k2 = jax.random.split(key, 3)
        fan_in = c_in * kernel_size * kernel_size
        bound = 1.0 / float(fan_in) ** 0.5
        w = jax.random.uniform(
            k1, (c_out, c_in, kernel_size, kernel_size), jnp.float32, -bound, bound
        )
        bb = jax.random.uniform(k2, (c_out,), jnp.float32, -bound, bound)
        params["convs"].append((w, bb))
        c_in, c_out = c_out, c_out * 2
        tmp = (tmp + 2 - kernel_size) // 2 + 1
    n_out_features = tmp * tmp * c_in
    key, k1, k2 = jax.random.split(key, 3)
    bound = 1.0 / float(n_out_features) ** 0.5
    params["out_w"] = jax.random.uniform(k1, (1, n_out_features), jnp.float32, -bound, bound)
    params["out_b"] = jax.random.uniform(k2, (1,), jnp.float32, -bound, bound)
    return params


def prepare_params(params, img_size):
    """One-time conversion of PyTorch-layout params into kernel layout
    (tap-major transposed, lane-padded OC, bf16 weights / fp32 bias)."""
    prepared = {"convs": []}
    conv_ocs = []
    tmp = img_size
    for (w, b) in params["convs"]:
        oc, c = w.shape[0], w.shape[1]
        oc_pad = _round_up(oc, 128)
        w_k = jnp.transpose(w, (2, 3, 1, 0)).reshape(9, c, oc)      # taps x (C, OC)
        w_k = jnp.pad(w_k, ((0, 0), (0, 0), (0, oc_pad - oc))).astype(jnp.bfloat16)
        b_k = jnp.pad(b, (0, oc_pad - oc)).reshape(1, oc_pad).astype(jnp.float32)
        prepared["convs"].append((w_k, b_k))
        conv_ocs.append(oc)
        tmp = (tmp + 2 - 3) // 2 + 1
    c_last = params["convs"][-1][0].shape[0]
    k = tmp * tmp * c_last
    # PyTorch flattens NCHW -> (c, h, w); our activations are NHWC -> (h, w, c).
    w_perm = params["out_w"].reshape(c_last, tmp, tmp).transpose(1, 2, 0).reshape(k, 1)
    n_pad = 128
    prepared["out_w"] = jnp.pad(w_perm, ((0, 0), (0, n_pad - 1))).astype(jnp.bfloat16)
    prepared["out_b"] = jnp.pad(params["out_b"].reshape(1, 1),
                                ((0, 0), (0, n_pad - 1))).astype(jnp.float32)
    return prepared, tuple(conv_ocs)


def dcgan_discriminator_forward(prepared, x, l_relu_slope, conv_ocs):
    # x arrives NCHW (PyTorch convention); convert once to NHWC bf16 internally.
    x = jnp.transpose(x, (0, 2, 3, 1)).astype(jnp.bfloat16)
    for (w_k, b_k), oc in zip(prepared["convs"], conv_ocs):
        x = conv2d_s2_p1_lrelu(x, w_k, b_k, oc, l_relu_slope)
    x_flat = x.reshape(x.shape[0], -1)
    return final_linear(x_flat, prepared["out_w"], prepared["out_b"])


# --------------------------------------------------------------------------- #
# Pure-JAX reference (fp32) for correctness sanity check
# --------------------------------------------------------------------------- #
def reference_forward(params, x, slope):
    for (w, b) in params["convs"]:
        x = jax.lax.conv_general_dilated(
            x, w, window_strides=(2, 2), padding=((1, 1), (1, 1)),
            dimension_numbers=("NCHW", "OIHW", "NCHW"),
        )
        x = x + b[None, :, None, None]
        x = jnp.where(x >= 0, x, slope * x)
    x = x.reshape(x.shape[0], -1)
    return x @ params["out_w"].T + params["out_b"]


if __name__ == "__main__":
    img_size = 16
    n_channels = 4
    n_filters = 8
    n_layers = 2
    l_relu_slope = 0.2
    batch = 2

    key = jax.random.PRNGKey(0)
    key, pkey, xkey = jax.random.split(key, 3)
    params = init_params(pkey, img_size, n_channels, n_filters, n_layers)
    prepared, conv_ocs = prepare_params(params, img_size)
    x = jax.random.normal(xkey, (batch, n_channels, img_size, img_size), jnp.float32)

    fwd = jax.jit(dcgan_discriminator_forward, static_argnums=(2, 3))
    out = jax.block_until_ready(fwd(prepared, x, l_relu_slope, conv_ocs))

    ref = jax.block_until_ready(reference_forward(params, x, l_relu_slope))
    assert out.shape == (batch, 1), out.shape
    # bf16 MXU inputs / bf16 activations vs fp32 reference -> loose tolerance.
    assert jnp.allclose(out, ref, rtol=5e-2, atol=5e-2), (out, ref)

    print("KERNEL_OK")
</pallas_src>

<mosaic_0001>
module attributes {stable_mosaic.version = 11 : i64} {
  func.func @_conv3x3_s2_kernel(%arg0: i32, %arg1: i32, %arg2: memref<1x88x16xbf16, #tpu.memory_space<vmem>>, %arg3: memref<9x4x128xbf16, #tpu.memory_space<vmem>>, %arg4: memref<1x128xf32, #tpu.memory_space<vmem>>, %arg5: memref<1x72x128xbf16, #tpu.memory_space<vmem>>) attributes {dimension_semantics = [#tpu.dimension_semantics<parallel>, #tpu.dimension_semantics<parallel>], iteration_bounds = array<i64: 2, 1>, scalar_prefetch = 0 : i64, scratch_operands = 0 : i64, tpu.core_type = #tpu.core_type<tc>, window_params = [{transform_indices = @transform_0, window_bounds = array<i64: 1, 88, 16>}, {transform_indices = @transform_1, window_bounds = array<i64: 9, 4, 128>}, {transform_indices = @transform_2, window_bounds = array<i64: 1, 128>}, {transform_indices = @transform_3, window_bounds = array<i64: 1, 72, 128>}]} {
    %c0 = arith.constant 0 : index
    %c0_0 = arith.constant 0 : index
    %c0_1 = arith.constant 0 : index
    %0 = vector.load %arg2[%c0, %c0_0, %c0_1] : memref<1x88x16xbf16, #tpu.memory_space<vmem>>, vector<1x72x4xbf16>
    %1 = vector.shape_cast %0 : vector<1x72x4xbf16> to vector<72x4xbf16>
    %c0_2 = arith.constant 0 : index
    %c0_3 = arith.constant 0 : index
    %c0_4 = arith.constant 0 : index
    %2 = vector.load %arg3[%c0_2, %c0_3, %c0_4] : memref<9x4x128xbf16, #tpu.memory_space<vmem>>, vector<1x4x128xbf16>
    %3 = vector.shape_cast %2 : vector<1x4x128xbf16> to vector<4x128xbf16>
    %cst = arith.constant dense<0.000000e+00> : vector<72x128xf32>
    %4 = tpu.matmul %1, %3, %cst {dimension_numbers = #tpu.dot_dimension_numbers<[1], [0], [0], [1], [0, 0, 1, 1], [], []>} : vector<72x4xbf16>, vector<4x128xbf16>, vector<72x128xf32> -> vector<72x128xf32>
    %c0_5 = arith.constant 0 : index
    %c0_6 = arith.constant 0 : index
    %c4 = arith.constant 4 : index
    %5 = vector.load %arg2[%c0_5, %c0_6, %c4] : memref<1x88x16xbf16, #tpu.memory_space<vmem>>, vector<1x72x4xbf16>
    %6 = vector.shape_cast %5 : vector<1x72x4xbf16> to vector<72x4xbf16>
    %c1 = arith.constant 1 : index
    %c0_7 = arith.constant 0 : index
    %c0_8 = arith.constant 0 : index
    %7 = vector.load %arg3[%c1, %c0_7, %c0_8] : memref<9x4x128xbf16, #tpu.memory_space<vmem>>, vector<1x4x128xbf16>
    %8 = vector.shape_cast %7 : vector<1x4x128xbf16> to vector<4x128xbf16>
    %cst_9 = arith.constant dense<0.000000e+00> : vector<72x128xf32>
    %9 = tpu.matmul %6, %8, %cst_9 {dimension_numbers = #tpu.dot_dimension_numbers<[1], [0], [0], [1], [0, 0, 1, 1], [], []>} : vector<72x4xbf16>, vector<4x128xbf16>, vector<72x128xf32> -> vector<72x128xf32>
    %10 = arith.addf %4, %9 : vector<72x128xf32>
    %c0_10 = arith.constant 0 : index
    %c1_11 = arith.constant 1 : index
    %c0_12 = arith.constant 0 : index
    %11 = vector.load %arg2[%c0_10, %c1_11, %c0_12] : memref<1x88x16xbf16, #tpu.memory_space<vmem>>, vector<1x72x4xbf16>
    %12 = vector.shape_cast %11 : vector<1x72x4xbf16> to vector<72x4xbf16>
    %c2 = arith.constant 2 : index
    %c0_13 = arith.constant 0 : index
    %c0_14 = arith.constant 0 : index
    %13 = vector.load %arg3[%c2, %c0_13, %c0_14] : memref<9x4x128xbf16, #tpu.memory_space<vmem>>, vector<1x4x128xbf16>
    %14 = vector.shape_cast %13 : vector<1x4x128xbf16> to vector<4x128xbf16>
    %cst_15 = arith.constant dense<0.000000e+00> : vector<72x128xf32>
    %15 = tpu.matmul %12, %14, %cst_15 {dimension_numbers = #tpu.dot_dimension_numbers<[1], [0], [0], [1], [0, 0, 1, 1], [], []>} : vector<72x4xbf16>, vector<4x128xbf16>, vector<72x128xf32> -> vector<72x128xf32>
    %16 = arith.addf %10, %15 : vector<72x128xf32>
    %c0_16 = arith.constant 0 : index
    %c0_17 = arith.constant 0 : index
    %c8 = arith.constant 8 : index
    %17 = vector.load %arg2[%c0_16, %c0_17, %c8] : memref<1x88x16xbf16, #tpu.memory_space<vmem>>, vector<1x72x4xbf16>
    %18 = vector.shape_cast %17 : vector<1x72x4xbf16> to vector<72x4xbf16>
    %c3 = arith.constant 3 : index
    %c0_18 = arith.constant 0 : index
    %c0_19 = arith.constant 0 : index
    %19 = vector.load %arg3[%c3, %c0_18, %c0_19] : memref<9x4x128xbf16, #tpu.memory_space<vmem>>, vector<1x4x128xbf16>
    %20 = vector.shape_cast %19 : vector<1x4x128xbf16> to vector<4x128xbf16>
    %cst_20 = arith.constant dense<0.000000e+00> : vector<72x128xf32>
    %21 = tpu.matmul %18, %20, %cst_20 {dimension_numbers = #tpu.dot_dimension_numbers<[1], [0], [0], [1], [0, 0, 1, 1], [], []>} : vector<72x4xbf16>, vector<4x128xbf16>, vector<72x128xf32> -> vector<72x128xf32>
    %22 = arith.addf %16, %21 : vector<72x128xf32>
    %c0_21 = arith.constant 0 : index
    %c0_22 = arith.constant 0 : index
    %c12 = arith.constant 12 : index
    %23 = vector.load %arg2[%c0_21, %c0_22, %c12] : memref<1x88x16xbf16, #tpu.memory_space<vmem>>, vector<1x72x4xbf16>
    %24 = vector.shape_cast %23 : vector<1x72x4xbf16> to vector<72x4xbf16>
    %c4_23 = arith.constant 4 : index
    %c0_24 = arith.constant 0 : index
    %c0_25 = arith.constant 0 : index
    %25 = vector.load %arg3[%c4_23, %c0_24, %c0_25] : memref<9x4x128xbf16, #tpu.memory_space<vmem>>, vector<1x4x128xbf16>
    %26 = vector.shape_cast %25 : vector<1x4x128xbf16> to vector<4x128xbf16>
    %cst_26 = arith.constant dense<0.000000e+00> : vector<72x128xf32>
    %27 = tpu.matmul %24, %26, %cst_26 {dimension_numbers = #tpu.dot_dimension_numbers<[1], [0], [0], [1], [0, 0, 1, 1], [], []>} : vector<72x4xbf16>, vector<4x128xbf16>, vector<72x128xf32> -> vector<72x128xf32>
    %28 = arith.addf %22, %27 : vector<72x128xf32>
    %c0_27 = arith.constant 0 : index
    %c1_28 = arith.constant 1 : index
    %c8_29 = arith.constant 8 : index
    %29 = vector.load %arg2[%c0_27, %c1_28, %c8_29] : memref<1x88x16xbf16, #tpu.memory_space<vmem>>, vector<1x72x4xbf16>
    %30 = vector.shape_cast %29 : vector<1x72x4xbf16> to vector<72x4xbf16>
    %c5 = arith.constant 5 : index
    %c0_30 = arith.constant 0 : index
    %c0_31 = arith.constant 0 : index
    %31 = vector.load %arg3[%c5, %c0_30, %c0_31] : memref<9x4x128xbf16, #tpu.memory_space<vmem>>, vector<1x4x128xbf16>
    %32 = vector.shape_cast %31 : vector<1x4x128xbf16> to vector<4x128xbf16>
    %cst_32 = arith.constant dense<0.000000e+00> : vector<72x128xf32>
    %33 = tpu.matmul %30, %32, %cst_32 {dimension_numbers = #tpu.dot_dimension_numbers<[1], [0], [0], [1], [0, 0, 1, 1], [], []>} : vector<72x4xbf16>, vector<4x128xbf16>, vector<72x128xf32> -> vector<72x128xf32>
    %34 = arith.addf %28, %33 : vector<72x128xf32>
    %c0_33 = arith.constant 0 : index
    %c9 = arith.constant 9 : index
    %c0_34 = arith.constant 0 : index
    %35 = vector.load %arg2[%c0_33, %c9, %c0_34] : memref<1x88x16xbf16, #tpu.memory_space<vmem>>, vector<1x72x4xbf16>
    %36 = vector.shape_cast %35 : vector<1x72x4xbf16> to vector<72x4xbf16>
    %c6 = arith.constant 6 : index
    %c0_35 = arith.constant 0 : index
    %c0_36 = arith.constant 0 : index
    %37 = vector.load %arg3[%c6, %c0_35, %c0_36] : memref<9x4x128xbf16, #tpu.memory_space<vmem>>, vector<1x4x128xbf16>
    %38 = vector.shape_cast %37 : vector<1x4x128xbf16> to vector<4x128xbf16>
    %cst_37 = arith.constant dense<0.000000e+00> : vector<72x128xf32>
    %39 = tpu.matmul %36, %38, %cst_37 {dimension_numbers = #tpu.dot_dimension_numbers<[1], [0], [0], [1], [0, 0, 1, 1], [], []>} : vector<72x4xbf16>, vector<4x128xbf16>, vector<72x128xf32> -> vector<72x128xf32>
    %40 = arith.addf %34, %39 : vector<72x128xf32>
    %c0_38 = arith.constant 0 : index
    %c9_39 = arith.constant 9 : index
    %c4_40 = arith.constant 4 : index
    %41 = vector.load %arg2[%c0_38, %c9_39, %c4_40] : memref<1x88x16xbf16, #tpu.memory_space<vmem>>, vector<1x72x4xbf16>
    %42 = vector.shape_cast %41 : vector<1x72x4xbf16> to vector<72x4xbf16>
    %c7 = arith.constant 7 : index
    %c0_41 = arith.constant 0 : index
    %c0_42 = arith.constant 0 : index
    %43 = vector.load %arg3[%c7, %c0_41, %c0_42] : memref<9x4x128xbf16, #tpu.memory_space<vmem>>, vector<1x4x128xbf16>
    %44 = vector.shape_cast %43 : vector<1x4x128xbf16> to vector<4x128xbf16>
    %cst_43 = arith.constant dense<0.000000e+00> : vector<72x128xf32>
    %45 = tpu.matmul %42, %44, %cst_43 {dimension_numbers = #tpu.dot_dimension_numbers<[1], [0], [0], [1], [0, 0, 1, 1], [], []>} : vector<72x4xbf16>, vector<4x128xbf16>, vector<72x128xf32> -> vector<72x128xf32>
    %46 = arith.addf %40, %45 : vector<72x128xf32>
    %c0_44 = arith.constant 0 : index
    %c10 = arith.constant 10 : index
    %c0_45 = arith.constant 0 : index
    %47 = vector.load %arg2[%c0_44, %c10, %c0_45] : memref<1x88x16xbf16, #tpu.memory_space<vmem>>, vector<1x72x4xbf16>
    %48 = vector.shape_cast %47 : vector<1x72x4xbf16> to vector<72x4xbf16>
    %c8_46 = arith.constant 8 : index
    %c0_47 = arith.constant 0 : index
    %c0_48 = arith.constant 0 : index
    %49 = vector.load %arg3[%c8_46, %c0_47, %c0_48] : memref<9x4x128xbf16, #tpu.memory_space<vmem>>, vector<1x4x128xbf16>
    %50 = vector.shape_cast %49 : vector<1x4x128xbf16> to vector<4x128xbf16>
    %cst_49 = arith.constant dense<0.000000e+00> : vector<72x128xf32>
    %51 = tpu.matmul %48, %50, %cst_49 {dimension_numbers = #tpu.dot_dimension_numbers<[1], [0], [0], [1], [0, 0, 1, 1], [], []>} : vector<72x4xbf16>, vector<4x128xbf16>, vector<72x128xf32> -> vector<72x128xf32>
    %52 = arith.addf %46, %51 : vector<72x128xf32>
    %c0_50 = arith.constant 0 : index
    %c0_51 = arith.constant 0 : index
    %53 = vector.load %arg4[%c0_50, %c0_51] : memref<1x128xf32, #tpu.memory_space<vmem>>, vector<1x128xf32>
    %54 = vector.broadcast %53 : vector<1x128xf32> to vector<72x128xf32>
    %55 = arith.addf %52, %54 : vector<72x128xf32>
    %cst_52 = arith.constant 0.000000e+00 : f32
    %56 = vector.broadcast %cst_52 : f32 to vector<72x128xf32>
    %57 = arith.cmpf oge, %55, %56 : vector<72x128xf32>
    %cst_53 = arith.constant 2.000000e-01 : f32
    %58 = vector.broadcast %cst_53 : f32 to vector<72x128xf32>
    %59 = arith.mulf %58, %55 : vector<72x128xf32>
    %60 = arith.select %57, %55, %59 : vector<72x128xi1>, vector<72x128xf32>
    %61 = arith.truncf %60 : vector<72x128xf32> to vector<72x128xbf16>
    %c0_54 = arith.constant 0 : index
    %c0_55 = arith.constant 0 : index
    %c0_56 = arith.constant 0 : index
    %62 = vector.load %arg5[%c0_54, %c0_55, %c0_56] : memref<1x72x128xbf16, #tpu.memory_space<vmem>>, vector<1x72x128xbf16>
    %63 = vector.shape_cast %62 : vector<1x72x128xbf16> to vector<72x128xbf16>
    %64 = vector.shape_cast %61 : vector<72x128xbf16> to vector<1x72x128xbf16>
    tpu.vector_store %arg5[%c0_54, %c0_55, %c0_56], %64 {strides = array<i32>} : memref<1x72x128xbf16, #tpu.memory_space<vmem>>, vector<1x72x128xbf16>,
    return
  }
  func.func @transform_0(%arg0: i32, %arg1: i32) -> (i32, i32, i32) {
    %c0_i32 = arith.constant 0 : i32
    %c0_i32_0 = arith.constant 0 : i32
    %c0_i32_1 = arith.constant 0 : i32
    return %arg0, %c0_i32, %c0_i32_0 : i32, i32, i32
  }
  func.func @transform_1(%arg0: i32, %arg1: i32) -> (i32, i32, i32) {
    %c0_i32 = arith.constant 0 : i32
    %c0_i32_0 = arith.constant 0 : i32
    %c0_i32_1 = arith.constant 0 : i32
    return %c0_i32, %c0_i32_0, %arg1 : i32, i32, i32
  }
  func.func @transform_2(%arg0: i32, %arg1: i32) -> (i32, i32) {
    %c0_i32 = arith.constant 0 : i32
    %c0_i32_0 = arith.constant 0 : i32
    return %c0_i32, %arg1 : i32, i32
  }
  func.func @transform_3(%arg0: i32, %arg1: i32) -> (i32, i32, i32) {
    %c0_i32 = arith.constant 0 : i32
    %c0_i32_0 = arith.constant 0 : i32
    return %arg0, %c0_i32, %arg1 : i32, i32, i32
  }
}

module attributes {stable_mosaic.version = 11 : i64} {
  func.func @_conv3x3_s2_kernel(%arg0: i32, %arg1: i32, %arg2: memref<1x32x32xbf16, #tpu.memory_space<vmem>>, %arg3: memref<9x8x128xbf16, #tpu.memory_space<vmem>>, %arg4: memref<1x128xf32, #tpu.memory_space<vmem>>, %arg5: memref<1x20x128xbf16, #tpu.memory_space<vmem>>) attributes {dimension_semantics = [#tpu.dimension_semantics<parallel>, #tpu.dimension_semantics<parallel>], iteration_bounds = array<i64: 2, 1>, scalar_prefetch = 0 : i64, scratch_operands = 0 : i64, tpu.core_type = #tpu.core_type<tc>, window_params = [{transform_indices = @transform_0, window_bounds = array<i64: 1, 32, 32>}, {transform_indices = @transform_1, window_bounds = array<i64: 9, 8, 128>}, {transform_indices = @transform_2, window_bounds = array<i64: 1, 128>}, {transform_indices = @transform_3, window_bounds = array<i64: 1, 20, 128>}]} {
    %c0 = arith.constant 0 : index
    %c0_0 = arith.constant 0 : index
    %c0_1 = arith.constant 0 : index
    %0 = vector.load %arg2[%c0, %c0_0, %c0_1] : memref<1x32x32xbf16, #tpu.memory_space<vmem>>, vector<1x20x8xbf16>
    %1 = vector.shape_cast %0 : vector<1x20x8xbf16> to vector<20x8xbf16>
    %c0_2 = arith.constant 0 : index
    %c0_3 = arith.constant 0 : index
    %c0_4 = arith.constant 0 : index
    %2 = vector.load %arg3[%c0_2, %c0_3, %c0_4] : memref<9x8x128xbf16, #tpu.memory_space<vmem>>, vector<1x8x128xbf16>
    %3 = vector.shape_cast %2 : vector<1x8x128xbf16> to vector<8x128xbf16>
    %cst = arith.constant dense<0.000000e+00> : vector<20x128xf32>
    %4 = tpu.matmul %1, %3, %cst {dimension_numbers = #tpu.dot_dimension_numbers<[1], [0], [0], [1], [0, 0, 1, 1], [], []>} : vector<20x8xbf16>, vector<8x128xbf16>, vector<20x128xf32> -> vector<20x128xf32>
    %c0_5 = arith.constant 0 : index
    %c0_6 = arith.constant 0 : index
    %c8 = arith.constant 8 : index
    %5 = vector.load %arg2[%c0_5, %c0_6, %c8] : memref<1x32x32xbf16, #tpu.memory_space<vmem>>, vector<1x20x8xbf16>
    %6 = vector.shape_cast %5 : vector<1x20x8xbf16> to vector<20x8xbf16>
    %c1 = arith.constant 1 : index
    %c0_7 = arith.constant 0 : index
    %c0_8 = arith.constant 0 : index
    %7 = vector.load %arg3[%c1, %c0_7, %c0_8] : memref<9x8x128xbf16, #tpu.memory_space<vmem>>, vector<1x8x128xbf16>
    %8 = vector.shape_cast %7 : vector<1x8x128xbf16> to vector<8x128xbf16>
    %cst_9 = arith.constant dense<0.000000e+00> : vector<20x128xf32>
    %9 = tpu.matmul %6, %8, %cst_9 {dimension_numbers = #tpu.dot_dimension_numbers<[1], [0], [0], [1], [0, 0, 1, 1], [], []>} : vector<20x8xbf16>, vector<8x128xbf16>, vector<20x128xf32> -> vector<20x128xf32>
    %10 = arith.addf %4, %9 : vector<20x128xf32>
    %c0_10 = arith.constant 0 : index
    %c1_11 = arith.constant 1 : index
    %c0_12 = arith.constant 0 : index
    %11 = vector.load %arg2[%c0_10, %c1_11, %c0_12] : memref<1x32x32xbf16, #tpu.memory_space<vmem>>, vector<1x20x8xbf16>
    %12 = vector.shape_cast %11 : vector<1x20x8xbf16> to vector<20x8xbf16>
    %c2 = arith.constant 2 : index
    %c0_13 = arith.constant 0 : index
    %c0_14 = arith.constant 0 : index
    %13 = vector.load %arg3[%c2, %c0_13, %c0_14] : memref<9x8x128xbf16, #tpu.memory_space<vmem>>, vector<1x8x128xbf16>
    %14 = vector.shape_cast %13 : vector<1x8x128xbf16> to vector<8x128xbf16>
    %cst_15 = arith.constant dense<0.000000e+00> : vector<20x128xf32>
    %15 = tpu.matmul %12, %14, %cst_15 {dimension_numbers = #tpu.dot_dimension_numbers<[1], [0], [0], [1], [0, 0, 1, 1], [], []>} : vector<20x8xbf16>, vector<8x128xbf16>, vector<20x128xf32> -> vector<20x128xf32>
    %16 = arith.addf %10, %15 : vector<20x128xf32>
    %c0_16 = arith.constant 0 : index
    %c0_17 = arith.constant 0 : index
    %c16 = arith.constant 16 : index
    %17 = vector.load %arg2[%c0_16, %c0_17, %c16] : memref<1x32x32xbf16, #tpu.memory_space<vmem>>, vector<1x20x8xbf16>
    %18 = vector.shape_cast %17 : vector<1x20x8xbf16> to vector<20x8xbf16>
    %c3 = arith.constant 3 : index
    %c0_18 = arith.constant 0 : index
    %c0_19 = arith.constant 0 : index
    %19 = vector.load %arg3[%c3, %c0_18, %c0_19] : memref<9x8x128xbf16, #tpu.memory_space<vmem>>, vector<1x8x128xbf16>
    %20 = vector.shape_cast %19 : vector<1x8x128xbf16> to vector<8x128xbf16>
    %cst_20 = arith.constant dense<0.000000e+00> : vector<20x128xf32>
    %21 = tpu.matmul %18, %20, %cst_20 {dimension_numbers = #tpu.dot_dimension_numbers<[1], [0], [0], [1], [0, 0, 1, 1], [], []>} : vector<20x8xbf16>, vector<8x128xbf16>, vector<20x128xf32> -> vector<20x128xf32>
    %22 = arith.addf %16, %21 : vector<20x128xf32>
    %c0_21 = arith.constant 0 : index
    %c0_22 = arith.constant 0 : index
    %c24 = arith.constant 24 : index
    %23 = vector.load %arg2[%c0_21, %c0_22, %c24] : memref<1x32x32xbf16, #tpu.memory_space<vmem>>, vector<1x20x8xbf16>
    %24 = vector.shape_cast %23 : vector<1x20x8xbf16> to vector<20x8xbf16>
    %c4 = arith.constant 4 : index
    %c0_23 = arith.constant 0 : index
    %c0_24 = arith.constant 0 : index
    %25 = vector.load %arg3[%c4, %c0_23, %c0_24] : memref<9x8x128xbf16, #tpu.memory_space<vmem>>, vector<1x8x128xbf16>
    %26 = vector.shape_cast %25 : vector<1x8x128xbf16> to vector<8x128xbf16>
    %cst_25 = arith.constant dense<0.000000e+00> : vector<20x128xf32>
    %27 = tpu.matmul %24, %26, %cst_25 {dimension_numbers = #tpu.dot_dimension_numbers<[1], [0], [0], [1], [0, 0, 1, 1], [], []>} : vector<20x8xbf16>, vector<8x128xbf16>, vector<20x128xf32> -> vector<20x128xf32>
    %28 = arith.addf %22, %27 : vector<20x128xf32>
    %c0_26 = arith.constant 0 : index
    %c1_27 = arith.constant 1 : index
    %c16_28 = arith.constant 16 : index
    %29 = vector.load %arg2[%c0_26, %c1_27, %c16_28] : memref<1x32x32xbf16, #tpu.memory_space<vmem>>, vector<1x20x8xbf16>
    %30 = vector.shape_cast %29 : vector<1x20x8xbf16> to vector<20x8xbf16>
    %c5 = arith.constant 5 : index
    %c0_29 = arith.constant 0 : index
    %c0_30 = arith.constant 0 : index
    %31 = vector.load %arg3[%c5, %c0_29, %c0_30] : memref<9x8x128xbf16, #tpu.memory_space<vmem>>, vector<1x8x128xbf16>
    %32 = vector.shape_cast %31 : vector<1x8x128xbf16> to vector<8x128xbf16>
    %cst_31 = arith.constant dense<0.000000e+00> : vector<20x128xf32>
    %33 = tpu.matmul %30, %32, %cst_31 {dimension_numbers = #tpu.dot_dimension_numbers<[1], [0], [0], [1], [0, 0, 1, 1], [], []>} : vector<20x8xbf16>, vector<8x128xbf16>, vector<20x128xf32> -> vector<20x128xf32>
    %34 = arith.addf %28, %33 : vector<20x128xf32>
    %c0_32 = arith.constant 0 : index
    %c5_33 = arith.constant 5 : index
    %c0_34 = arith.constant 0 : index
    %35 = vector.load %arg2[%c0_32, %c5_33, %c0_34] : memref<1x32x32xbf16, #tpu.memory_space<vmem>>, vector<1x20x8xbf16>
    %36 = vector.shape_cast %35 : vector<1x20x8xbf16> to vector<20x8xbf16>
    %c6 = arith.constant 6 : index
    %c0_35 = arith.constant 0 : index
    %c0_36 = arith.constant 0 : index
    %37 = vector.load %arg3[%c6, %c0_35, %c0_36] : memref<9x8x128xbf16, #tpu.memory_space<vmem>>, vector<1x8x128xbf16>
    %38 = vector.shape_cast %37 : vector<1x8x128xbf16> to vector<8x128xbf16>
    %cst_37 = arith.constant dense<0.000000e+00> : vector<20x128xf32>
    %39 = tpu.matmul %36, %38, %cst_37 {dimension_numbers = #tpu.dot_dimension_numbers<[1], [0], [0], [1], [0, 0, 1, 1], [], []>} : vector<20x8xbf16>, vector<8x128xbf16>, vector<20x128xf32> -> vector<20x128xf32>
    %40 = arith.addf %34, %39 : vector<20x128xf32>
    %c0_38 = arith.constant 0 : index
    %c5_39 = arith.constant 5 : index
    %c8_40 = arith.constant 8 : index
    %41 = vector.load %arg2[%c0_38, %c5_39, %c8_40] : memref<1x32x32xbf16, #tpu.memory_space<vmem>>, vector<1x20x8xbf16>
    %42 = vector.shape_cast %41 : vector<1x20x8xbf16> to vector<20x8xbf16>
    %c7 = arith.constant 7 : index
    %c0_41 = arith.constant 0 : index
    %c0_42 = arith.constant 0 : index
    %43 = vector.load %arg3[%c7, %c0_41, %c0_42] : memref<9x8x128xbf16, #tpu.memory_space<vmem>>, vector<1x8x128xbf16>
    %44 = vector.shape_cast %43 : vector<1x8x128xbf16> to vector<8x128xbf16>
    %cst_43 = arith.constant dense<0.000000e+00> : vector<20x128xf32>
    %45 = tpu.matmul %42, %44, %cst_43 {dimension_numbers = #tpu.dot_dimension_numbers<[1], [0], [0], [1], [0, 0, 1, 1], [], []>} : vector<20x8xbf16>, vector<8x128xbf16>, vector<20x128xf32> -> vector<20x128xf32>
    %46 = arith.addf %40, %45 : vector<20x128xf32>
    %c0_44 = arith.constant 0 : index
    %c6_45 = arith.constant 6 : index
    %c0_46 = arith.constant 0 : index
    %47 = vector.load %arg2[%c0_44, %c6_45, %c0_46] : memref<1x32x32xbf16, #tpu.memory_space<vmem>>, vector<1x20x8xbf16>
    %48 = vector.shape_cast %47 : vector<1x20x8xbf16> to vector<20x8xbf16>
    %c8_47 = arith.constant 8 : index
    %c0_48 = arith.constant 0 : index
    %c0_49 = arith.constant 0 : index
    %49 = vector.load %arg3[%c8_47, %c0_48, %c0_49] : memref<9x8x128xbf16, #tpu.memory_space<vmem>>, vector<1x8x128xbf16>
    %50 = vector.shape_cast %49 : vector<1x8x128xbf16> to vector<8x128xbf16>
    %cst_50 = arith.constant dense<0.000000e+00> : vector<20x128xf32>
    %51 = tpu.matmul %48, %50, %cst_50 {dimension_numbers = #tpu.dot_dimension_numbers<[1], [0], [0], [1], [0, 0, 1, 1], [], []>} : vector<20x8xbf16>, vector<8x128xbf16>, vector<20x128xf32> -> vector<20x128xf32>
    %52 = arith.addf %46, %51 : vector<20x128xf32>
    %c0_51 = arith.constant 0 : index
    %c0_52 = arith.constant 0 : index
    %53 = vector.load %arg4[%c0_51, %c0_52] : memref<1x128xf32, #tpu.memory_space<vmem>>, vector<1x128xf32>
    %54 = vector.broadcast %53 : vector<1x128xf32> to vector<20x128xf32>
    %55 = arith.addf %52, %54 : vector<20x128xf32>
    %cst_53 = arith.constant 0.000000e+00 : f32
    %56 = vector.broadcast %cst_53 : f32 to vector<20x128xf32>
    %57 = arith.cmpf oge, %55, %56 : vector<20x128xf32>
    %cst_54 = arith.constant 2.000000e-01 : f32
    %58 = vector.broadcast %cst_54 : f32 to vector<20x128xf32>
    %59 = arith.mulf %58, %55 : vector<20x128xf32>
    %60 = arith.select %57, %55, %59 : vector<20x128xi1>, vector<20x128xf32>
    %61 = arith.truncf %60 : vector<20x128xf32> to vector<20x128xbf16>
    %c0_55 = arith.constant 0 : index
    %c0_56 = arith.constant 0 : index
    %c0_57 = arith.constant 0 : index
    %62 = vector.load %arg5[%c0_55, %c0_56, %c0_57] : memref<1x20x128xbf16, #tpu.memory_space<vmem>>, vector<1x20x128xbf16>
    %63 = vector.shape_cast %62 : vector<1x20x128xbf16> to vector<20x128xbf16>
    %64 = vector.shape_cast %61 : vector<20x128xbf16> to vector<1x20x128xbf16>
    tpu.vector_store %arg5[%c0_55, %c0_56, %c0_57], %64 {strides = array<i32>} : memref<1x20x128xbf16, #tpu.memory_space<vmem>>, vector<1x20x128xbf16>,
    return
  }
  func.func @transform_0(%arg0: i32, %arg1: i32) -> (i32, i32, i32) {
    %c0_i32 = arith.constant 0 : i32
    %c0_i32_0 = arith.constant 0 : i32
    %c0_i32_1 = arith.constant 0 : i32
    return %arg0, %c0_i32, %c0_i32_0 : i32, i32, i32
  }
  func.func @transform_1(%arg0: i32, %arg1: i32) -> (i32, i32, i32) {
    %c0_i32 = arith.constant 0 : i32
    %c0_i32_0 = arith.constant 0 : i32
    %c0_i32_1 = arith.constant 0 : i32
    return %c0_i32, %c0_i32_0, %arg1 : i32, i32, i32
  }
  func.func @transform_2(%arg0: i32, %arg1: i32) -> (i32, i32) {
    %c0_i32 = arith.constant 0 : i32
    %c0_i32_0 = arith.constant 0 : i32
    return %c0_i32, %arg1 : i32, i32
  }
  func.func @transform_3(%arg0: i32, %arg1: i32) -> (i32, i32, i32) {
    %c0_i32 = arith.constant 0 : i32
    %c0_i32_0 = arith.constant 0 : i32
    return %arg0, %c0_i32, %arg1 : i32, i32, i32
  }
}

module attributes {stable_mosaic.version = 11 : i64} {
  func.func @_linear_kernel(%arg0: i32, %arg1: memref<2x256xbf16, #tpu.memory_space<vmem>>, %arg2: memref<256x128xbf16, #tpu.memory_space<vmem>>, %arg3: memref<1x128xf32, #tpu.memory_space<vmem>>, %arg4: memref<2x128xf32, #tpu.memory_space<vmem>>) attributes {dimension_semantics = [#tpu.dimension_semantics<arbitrary>], iteration_bounds = array<i64: 1>, scalar_prefetch = 0 : i64, scratch_operands = 0 : i64, tpu.core_type = #tpu.core_type<tc>, window_params = [{pipeline_mode = #tpu.pipeline_mode<synchronous>, transform_indices = @transform_0, window_bounds = array<i64: 2, 256>}, {pipeline_mode = #tpu.pipeline_mode<synchronous>, transform_indices = @transform_1, window_bounds = array<i64: 256, 128>}, {pipeline_mode = #tpu.pipeline_mode<synchronous>, transform_indices = @transform_2, window_bounds = array<i64: 1, 128>}, {pipeline_mode = #tpu.pipeline_mode<synchronous>, transform_indices = @transform_3, window_bounds = array<i64: 2, 128>}]} {
    %c0 = arith.constant 0 : index
    %c0_0 = arith.constant 0 : index
    %0 = vector.load %arg1[%c0, %c0_0] : memref<2x256xbf16, #tpu.memory_space<vmem>>, vector<2x256xbf16>
    %c0_1 = arith.constant 0 : index
    %c0_2 = arith.constant 0 : index
    %1 = vector.load %arg2[%c0_1, %c0_2] : memref<256x128xbf16, #tpu.memory_space<vmem>>, vector<256x128xbf16>
    %cst = arith.constant dense<0.000000e+00> : vector<2x128xf32>
    %2 = tpu.matmul %0, %1, %cst {dimension_numbers = #tpu.dot_dimension_numbers<[1], [0], [0], [1], [0, 0, 1, 1], [], []>} : vector<2x256xbf16>, vector<256x128xbf16>, vector<2x128xf32> -> vector<2x128xf32>
    %c0_3 = arith.constant 0 : index
    %c0_4 = arith.constant 0 : index
    %3 = vector.load %arg3[%c0_3, %c0_4] : memref<1x128xf32, #tpu.memory_space<vmem>>, vector<1x128xf32>
    %4 = vector.broadcast %3 : vector<1x128xf32> to vector<2x128xf32>
    %5 = arith.addf %2, %4 : vector<2x128xf32>
    %c0_5 = arith.constant 0 : index
    %c0_6 = arith.constant 0 : index
    %6 = vector.load %arg4[%c0_5, %c0_6] : memref<2x128xf32, #tpu.memory_space<vmem>>, vector<2x128xf32>
    tpu.vector_store %arg4[%c0_5, %c0_6], %5 {strides = array<i32>} : memref<2x128xf32, #tpu.memory_space<vmem>>, vector<2x128xf32>,
    return
  }
  func.func @transform_0(%arg0: i32) -> (i32, i32) {
    %c0_i32 = arith.constant 0 : i32
    %c0_i32_0 = arith.constant 0 : i32
    %c0_i32_1 = arith.constant 0 : i32
    return %c0_i32, %c0_i32_0 : i32, i32
  }
  func.func @transform_1(%arg0: i32) -> (i32, i32) {
    %c0_i32 = arith.constant 0 : i32
    %c0_i32_0 = arith.constant 0 : i32
    %c0_i32_1 = arith.constant 0 : i32
    return %c0_i32, %c0_i32_0 : i32, i32
  }
  func.func @transform_2(%arg0: i32) -> (i32, i32) {
    %c0_i32 = arith.constant 0 : i32
    %c0_i32_0 = arith.constant 0 : i32
    %c0_i32_1 = arith.constant 0 : i32
    return %c0_i32, %c0_i32_0 : i32, i32
  }
  func.func @transform_3(%arg0: i32) -> (i32, i32) {
    %c0_i32 = arith.constant 0 : i32
    %c0_i32_0 = arith.constant 0 : i32
    %c0_i32_1 = arith.constant 0 : i32
    return %c0_i32, %c0_i32_0 : i32, i32
  }
}

</mosaic_0001>

<llo_original>
// kernel: dcgan_discriminator_forward.3
$region0: #{dcgan_discriminator_forward.3}
  #allocation0 [shape = 'u32[]', space=smem, size = 0x4, offset = 0x4, fixed_abs, tag = 'smem constant byte address 0x4 - core index']
  #allocation1 [shape = 'u32[144,128]{1,0:T(1,128)}', space=vmem, size = 0x12000, scoped, tag = 'internal scratch']
  %s0 = inlined_call_operand.vmem [shape: bf16[2,88,16], index: 0, kind: input, shape index: {}]
  %s1 = inlined_call_operand.vmem [shape: bf16[9,4,128], index: 1, kind: input, shape index: {}]
  %s2 = inlined_call_operand.vmem [shape: f32[1,128], index: 2, kind: input, shape index: {}]
  %s3 = inlined_call_operand.vmem [shape: bf16[2,72,128], index: 3, kind: output, shape index: {}]
  %s4 = sld [smem:[#allocation0]]
  $region45: #{dcgan_discriminator_forward.3} parent=0
    _
  %s6 = ssub.s32 1, %s4
  %s7 = scalar_select 0, %s6, %s4
  loop: start=0, step=1, limit=4
  $region2: #{dcgan_discriminator_forward.3} parent=0 // loop_pre_header
    _
  $region3: #{dcgan_discriminator_forward.3} parent=0 // loop_header
    %s9 = sphi 0, %s13
    %p10 = scmp.ge.s32.totalorder %s9, 4
    %s16 = sphi 0, %s28
    %s17 = sphi 0, %s24
    %s18 = sphi 0, %s16
    %s19 = sphi 0, %s17
    %s20 = sphi 0, %s18
    %s21 = sphi 0, %s19
    %s31 = sphi 0, %s33
    %s34 = sphi 0, %s31
    %s35 = sphi 0, %s34
    %s51 = sphi 0, %s35
    %s57 = sphi 0, %s59
    %s60 = sphi 0, %s57
    %s61 = sphi 0, %s60
    %s77 = sphi 0, %s61
    %s83 = sphi 0, %s85
    %s86 = sphi 0, %s83
    %s87 = sphi 0, %s86
    %s103 = sphi 0, %s87
    %s111 = sphi 0, %s113
    %s114 = sphi 0, %s111
    %s115 = sphi 0, %s114
    %s131 = sphi 0, %s115
  $region4: #{dcgan_discriminator_forward.3} parent=0 // loop_header_branch
    %12 = sbr.rel (%p10) target = $region8
  $region5: #{dcgan_discriminator_forward.3} parent=0 // loop_body
    %s14 = ssub.s32 %s9, 1
    %s15 = ssub.s32 %s9, 2
    %s22 = sadd.s32 1, %s17
    %p23 = scmp.ge.s32.totalorder %s22, 1
    %s24 = scalar_select %p23, 0, %s22
    %s25 = sadd.s32 1, %s16
    %s26 = scalar_select %p23, %s25, %s16
    %p27 = scmp.ge.s32.totalorder %s26, 2
    %s28 = scalar_select %p27, 0, %s26
    %s29 = ssub.s32 %s16, %s28
    %p30 = scmp.eq.s32.totalorder %s29, 0
    %s32 = sadd.s32 %s31, 1
    %s33 = scalar_select %p30, %s31, %s32
    %p36 = pneg %p30
    %p37 = scmp.eq.s32.totalorder %s9, 1
    %p38 = por %p36, %p37
    %p39 = scmp.ne.s32.totalorder %s31, %s34
    %p40 = scmp.eq.s32.totalorder %s9, 0
    %p41 = por %p39, %p40
    %p42 = scmp.ne.s32.totalorder %s31, %s34
    %p43 = scmp.eq.s32.totalorder %s14, 1
    %p44 = por %p42, %p43
    %p45 = scmp.ne.s32.totalorder %s34, %s35
    %p46 = scmp.eq.s32.totalorder %s14, 0
    %p47 = por %p45, %p46
    %p48 = scmp.ne.s32.totalorder %s34, %s35
    %p49 = scmp.eq.s32.totalorder %s15, 1
    %p50 = por %p48, %p49
    %p52 = scmp.ne.s32.totalorder %s35, %s51
    %p53 = scmp.eq.s32.totalorder %s15, 0
    %p54 = por %p52, %p53
    %s55 = ssub.s32 %s17, %s24
    %p56 = scmp.eq.s32.totalorder %s55, 0
    %s58 = sadd.s32 %s57, 1
    %s59 = scalar_select %p56, %s57, %s58
    %p62 = pneg %p56
    %p63 = scmp.eq.s32.totalorder %s9, 1
    %p64 = por %p62, %p63
    %p65 = scmp.ne.s32.totalorder %s57, %s60
    %p66 = scmp.eq.s32.totalorder %s9, 0
    %p67 = por %p65, %p66
    %p68 = scmp.ne.s32.totalorder %s57, %s60
    %p69 = scmp.eq.s32.totalorder %s14, 1
    %p70 = por %p68, %p69
    %p71 = scmp.ne.s32.totalorder %s60, %s61
    %p72 = scmp.eq.s32.totalorder %s14, 0
    %p73 = por %p71, %p72
    %p74 = scmp.ne.s32.totalorder %s60, %s61
    %p75 = scmp.eq.s32.totalorder %s15, 1
    %p76 = por %p74, %p75
    %p78 = scmp.ne.s32.totalorder %s61, %s77
    %p79 = scmp.eq.s32.totalorder %s15, 0
    %p80 = por %p78, %p79
    %s81 = ssub.s32 %s17, %s24
    %p82 = scmp.eq.s32.totalorder %s81, 0
    %s84 = sadd.s32 %s83, 1
    %s85 = scalar_select %p82, %s83, %s84
    %p88 = pneg %p82
    %p89 = scmp.eq.s32.totalorder %s9, 1
    %p90 = por %p88, %p89
    %p91 = scmp.ne.s32.totalorder %s83, %s86
    %p92 = scmp.eq.s32.totalorder %s9, 0
    %p93 = por %p91, %p92
    %p94 = scmp.ne.s32.totalorder %s83, %s86
    %p95 = scmp.eq.s32.totalorder %s14, 1
    %p96 = por %p94, %p95
    %p97 = scmp.ne.s32.totalorder %s86, %s87
    %p98 = scmp.eq.s32.totalorder %s14, 0
    %p99 = por %p97, %p98
    %p100 = scmp.ne.s32.totalorder %s86, %s87
    %p101 = scmp.eq.s32.totalorder %s15, 1
    %p102 = por %p100, %p101
    %p104 = scmp.ne.s32.totalorder %s87, %s103
    %p105 = scmp.eq.s32.totalorder %s15, 0
    %p106 = por %p104, %p105
    %s107 = ssub.s32 %s16, %s28
    %s108 = ssub.s32 %s17, %s24
    %s109 = sor.u32 %s107, %s108
    %p110 = scmp.eq.s32.totalorder %s109, 0
    %s112 = sadd.s32 %s111, 1
    %s113 = scalar_select %p110, %s111, %s112
    %p116 = pneg %p110
    %p117 = scmp.eq.s32.totalorder %s9, 1
    %p118 = por %p116, %p117
    %p119 = scmp.ne.s32.totalorder %s111, %s114
    %p120 = scmp.eq.s32.totalorder %s9, 0
    %p121 = por %p119, %p120
    %p122 = scmp.ne.s32.totalorder %s111, %s114
    %p123 = scmp.eq.s32.totalorder %s14, 1
    %p124 = por %p122, %p123
    %p125 = scmp.ne.s32.totalorder %s114, %s115
    %p126 = scmp.eq.s32.totalorder %s14, 0
    %p127 = por %p125, %p126
    %p128 = scmp.ne.s32.totalorder %s114, %s115
    %p129 = scmp.eq.s32.totalorder %s15, 1
    %p130 = por %p128, %p129
    %p132 = scmp.ne.s32.totalorder %s115, %s131
    %p133 = scmp.eq.s32.totalorder %s15, 0
    %p134 = por %p132, %p133
    %p135 = scmp.le.s32.totalorder 1, %s9
    %p136 = scmp.lt.s32.totalorder %s9, 3
    %p137 = pnand %p135, %p136
    %p138 = pneg %p137
    // Predicated region
    $region9: #{dcgan_discriminator_forward.3} parent=5 // pred_check
      _
    $region10: #{dcgan_discriminator_forward.3} parent=5 // pred_check_branch
      %140 = sbr.rel (%p137) target = $region12
    $region11: #{dcgan_discriminator_forward.3} parent=5 // pred_region
      %s141 = ssub.s32 %s9, 1
      // Predicated region
      $region13: #{dcgan_discriminator_forward.3} parent=11 // pred_check
        %p142 = pneg %p73
      $region14: #{dcgan_discriminator_forward.3} parent=11 // pred_check_branch
        %144 = sbr.rel (%p142) target = $region16
      $region15: #{dcgan_discriminator_forward.3} parent=11 // pred_region
        %p145 = scmp.lt.s32.totalorder %s19, 0
        %s146 = scalar_select %p145, %s19, 0
        %s147 = smul.addr %s146, 2
        %s148 = scalar_lea.vmem %s1, %s147
      $region16: #{dcgan_discriminator_forward.3} parent=11 // pred_fallthru
        _
      // Predicated region
      $region17: #{dcgan_discriminator_forward.3} parent=11 // pred_check
        %p149 = pneg %p99
      $region18: #{dcgan_discriminator_forward.3} parent=11 // pred_check_branch
        %151 = sbr.rel (%p149) target = $region20
      $region19: #{dcgan_discriminator_forward.3} parent=11 // pred_region
        %p152 = scmp.lt.s32.totalorder %s19, 0
        %s153 = scalar_select %p152, %s19, 0
        %s154 = scalar_lea.vmem %s2, %s153
      $region20: #{dcgan_discriminator_forward.3} parent=11 // pred_fallthru
        _
    $region12: #{dcgan_discriminator_forward.3} parent=5 // pred_fallthru
      _
    %p155 = scmp.lt.s32.totalorder %s9, 2
    // Predicated region
    $region21: #{dcgan_discriminator_forward.3} parent=5 // pred_check
      %p156 = pneg %p155
    $region22: #{dcgan_discriminator_forward.3} parent=5 // pred_check_branch
      %158 = sbr.rel (%p156) target = $region24
    $region23: #{dcgan_discriminator_forward.3} parent=5 // pred_region
      // Predicated region
      $region25: #{dcgan_discriminator_forward.3} parent=23 // pred_check
        %p159 = pneg %p41
      $region26: #{dcgan_discriminator_forward.3} parent=23 // pred_check_branch
        %161 = sbr.rel (%p159) target = $region28
      $region27: #{dcgan_discriminator_forward.3} parent=23 // pred_region
        %p162 = scmp.lt.s32.totalorder %s16, 1
        %s163 = scalar_select %p162, %s16, 1
        %s164 = smul.addr %s163, 11
        %s165 = smul.addr %s164, 4
        %s166 = scalar_lea.vmem %s0, %s165
      $region28: #{dcgan_discriminator_forward.3} parent=23 // pred_fallthru
        _
    $region24: #{dcgan_discriminator_forward.3} parent=5 // pred_fallthru
      _
    %p167 = scmp.le.s32.totalorder 1, %s9
    %p168 = scmp.lt.s32.totalorder %s9, 3
    %p169 = pnand %p167, %p168
    %p170 = pneg %p169
    // Predicated region
    $region29: #{dcgan_discriminator_forward.3} parent=5 // pred_check
      _
    $region30: #{dcgan_discriminator_forward.3} parent=5 // pred_check_branch
      %172 = sbr.rel (%p169) target = $region32
    $region31: #{dcgan_discriminator_forward.3} parent=5 // pred_region
      %s173 = ssub.s32 %s9, 1
      %p174 = scmp.lt.s32.totalorder %s18, 1
      %s175 = scalar_select %p174, %s18, 1
      %s176 = smul.addr %s175, 11
      %s177 = smul.addr %s176, 4
      %s178 = scalar_lea.vmem %s0, %s177
      %p179 = pneg %p47
      %p180 = pneg %p44
      %p181 = scmp.lt.s32.totalorder %s19, 0
      %s182 = scalar_select %p181, %s19, 0
      %s183 = smul.addr %s182, 2
      %s184 = scalar_lea.vmem %s1, %s183
      %p185 = pneg %p73
      %p186 = pneg %p70
      %p187 = scmp.lt.s32.totalorder %s19, 0
      %s188 = scalar_select %p187, %s19, 0
      %s189 = scalar_lea.vmem %s2, %s188
      %p190 = pneg %p99
      %p191 = pneg %p96
      %p192 = pneg %p127
      %p193 = pneg %p124
      %p194 = scmp.lt.s32.totalorder %s18, 1
      %s195 = scalar_select %p194, %s18, 1
      %p196 = scmp.lt.s32.totalorder %s19, 0
      %s197 = scalar_select %p196, %s19, 0
      %s198 = smul.addr %s195, 9
      %s199 = sadd.s32 %s197, %s198
      %s200 = smul.addr %s199, 4
      %s201 = scalar_lea.vmem %s3, %s200
      %p202 = scmp.lt.s32.totalorder %s18, 1
      %s203 = scalar_select %p202, %s18, 1
      %s204 = smul.addr %s203, 11
      %s205 = smul.addr %s204, 4
      %s206 = scalar_lea.vmem %s0, %s205
      %p207 = scmp.lt.s32.totalorder %s19, 0
      %s208 = scalar_select %p207, %s19, 0
      %s209 = smul.addr %s208, 2
      %s210 = scalar_lea.vmem %s1, %s209
      %p211 = scmp.lt.s32.totalorder %s19, 0
      %s212 = scalar_select %p211, %s19, 0
      %s213 = scalar_lea.vmem %s2, %s212
      %p214 = scmp.lt.s32.totalorder %s18, 1
      %s215 = scalar_select %p214, %s18, 1
      %p216 = scmp.lt.s32.totalorder %s19, 0
      %s217 = scalar_select %p216, %s19, 0
      %s218 = smul.addr %s215, 9
      %s219 = sadd.s32 %s217, %s218
      %s220 = smul.addr %s219, 4
      %s221 = scalar_lea.vmem %s3, %s220
      %v223 = vld [vmem:[%s206] sm:$0xf]
      %v224 = vld [vmem:[%s206 + $0x4] sm:$0xf]
      %v225 = vld [vmem:[%s206 + $0x8] sm:$0xf]
      %v226 = vld [vmem:[%s206 + $0xc] sm:$0xf]
      %v227 = vld [vmem:[%s206 + $0x10] sm:$0xf]
      %v228 = vld [vmem:[%s206 + $0x14] sm:$0xf]
      %v229 = vld [vmem:[%s206 + $0x18] sm:$0xf]
      %v230 = vld [vmem:[%s206 + $0x1c] sm:$0xf]
      %v231 = vld [vmem:[%s206 + $0x20] sm:$0xf]
      %v232 = vld [vmem:[%s210] sm:$0x3]
      %s233 = scalar_lea.vmem %s210, 2
      %v234 = vld [vmem:[%s233] sm:$0x3]
      %v244 = vunpack.c.l.b16 %v223
      %v245 = vunpack.c.l.b16 %v224
      %v246 = vunpack.c.l.b16 %v225
      %v247 = vunpack.c.l.b16 %v226
      %v248 = vunpack.c.l.b16 %v227
      %v249 = vunpack.c.l.b16 %v228
      %v250 = vunpack.c.l.b16 %v229
      %v251 = vunpack.c.l.b16 %v230
      %v252 = vunpack.c.l.b16 %v231
      %v253 = vpack.c.b16 %v245, %v244
      %v254 = vpack.c.b16 %v247, %v246
      %v255 = vpack.c.b16 %v249, %v248
      %v256 = vpack.c.b16 %v251, %v250
      %v257 = vpack.c.b16 %v252, %v252
      %258 = vrot.lane.b32.xlu0 %v253, 124
      %v259 = vpop.permute.xlu0 %258
      %260 = vrot.lane.b32.xlu0 %v254, 124
      %v261 = vpop.permute.xlu0 %260
      %262 = vrot.lane.b32.xlu0 %v255, 124
      %v263 = vpop.permute.xlu0 %262
      %264 = vrot.lane.b32.xlu0 %v256, 124
      %v265 = vpop.permute.xlu0 %264
      %266 = vrot.lane.b32.xlu0 %v257, 124
      %v267 = vpop.permute.xlu0 %266
      %vm268 = vcmask 31744
      %v270 = vsel %vm268, %v259, 0
      %v273 = vsel %vm268, %v261, 0
      %v276 = vsel %vm268, %v263, 0
      %v279 = vsel %vm268, %v265, 0
      %v282 = vsel %vm268, %v267, 0
      %vm284 = vcmask 1041408
      %v286 = vsel %vm284, %v234, 0
      %288 = vmatprep.subr.bf16.mxu0 0
      %289 = vmatpush1.bf16.msra.mxu0 0
      %290 = vmatprep.subr.bf16.mxu0 0
      %291 = vmatpush1.bf16.msra.mxu0 0
      %292 = vmatprep.subr.bf16.mxu0 0
      %293 = vmatpush1.bf16.msra.mxu0 0
      %294 = vmatprep.subr.bf16.mxu0 0
      %295 = vmatpush1.bf16.msra.mxu0 0
      %296 = vmatprep.subr.bf16.mxu0 0
      %297 = vmatpush1.bf16.msra.mxu0 0
      %298 = vmatprep.subr.bf16.mxu0 0
      %299 = vmatpush1.bf16.msra.mxu0 0
      %300 = vmatprep.subr.bf16.mxu0 0
      %301 = vmatpush1.bf16.msra.mxu0 0
      %302 = vmatprep.subr.bf16.mxu0 0
      %303 = vmatpush1.bf16.msra.mxu0 %v286
      %304 = vmatprep.subr.bf16.mxu0 0
      %305 = vmatpush2.bf16.msra.mxu0 0
      %306 = vmatprep.subr.bf16.mxu0 0
      %307 = vmatpush2.bf16.msra.mxu0 0
      %308 = vmatprep.subr.bf16.mxu0 0
      %309 = vmatpush2.bf16.msra.mxu0 0
      %310 = vmatprep.subr.bf16.mxu0 0
      %311 = vmatpush2.bf16.msra.mxu0 0
      %312 = vmatprep.subr.bf16.mxu0 0
      %313 = vmatpush2.bf16.msra.mxu0 0
      %314 = vmatprep.subr.bf16.mxu0 0
      %315 = vmatpush2.bf16.msra.mxu0 0
      %316 = vmatprep.subr.bf16.mxu0 0
      %317 = vmatpush2.bf16.msra.mxu0 0
      %318 = vmatprep.subr.bf16.mxu0 0
      %319 = vmatpush2.bf16.msra.mxu0 0
      %320 = vmatprep.mubr.bf16.mxu0 0
      %321 = vmatmul.mubr.bf16.gmra.mxu0 %v270
      %v322 = vpop.f32.mrf.mxu0
      %v323 = vadd.f32 0.0, %v322
      %v324 = vpop.f32.mrf.mxu0
      %v325 = vpop.f32.mrf.mxu0
      %v326 = vadd.f32 0.0, %v325
      %v327 = vpop.f32.mrf.mxu0
      %328 = vmatprep.mubr.bf16.mxu0 0
      %329 = vmatmul.mubr.bf16.gmra.mxu0 %v273
      %v330 = vpop.f32.mrf.mxu0
      %v331 = vadd.f32 0.0, %v330
      %v332 = vpop.f32.mrf.mxu0
      %v333 = vpop.f32.mrf.mxu0
      %v334 = vadd.f32 0.0, %v333
      %v335 = vpop.f32.mrf.mxu0
      %336 = vmatprep.mubr.bf16.mxu0 0
      %337 = vmatmul.mubr.bf16.gmra.mxu0 %v276
      %v338 = vpop.f32.mrf.mxu0
      %v339 = vadd.f32 0.0, %v338
      %v340 = vpop.f32.mrf.mxu0
      %v341 = vpop.f32.mrf.mxu0
      %v342 = vadd.f32 0.0, %v341
      %v343 = vpop.f32.mrf.mxu0
      %344 = vmatprep.mubr.bf16.mxu0 0
      %345 = vmatmul.mubr.bf16.gmra.mxu0 %v279
      %v346 = vpop.f32.mrf.mxu0
      %v347 = vadd.f32 0.0, %v346
      %v348 = vpop.f32.mrf.mxu0
      %v349 = vpop.f32.mrf.mxu0
      %v350 = vadd.f32 0.0, %v349
      %v351 = vpop.f32.mrf.mxu0
      %352 = vmatprep.mubr.bf16.mxu0 0
      %353 = vmatmul.mubr.bf16.gmra.mxu0 %v282
      %v354 = vpop.f32.mrf.mxu0
      %v355 = vadd.f32 0.0, %v354
      %v356 = vpop.f32.mrf.mxu0
      %v357 = vpop.f32.mrf.mxu0
      %v358 = vpop.f32.mrf.mxu0
      %359 = vdwg.mxu0
      %v361 = vsel %vm268, %v253, 0
      %v364 = vsel %vm268, %v254, 0
      %v367 = vsel %vm268, %v255, 0
      %v370 = vsel %vm268, %v256, 0
      %v373 = vsel %vm268, %v257, 0
      %v376 = vsel %vm284, %v232, 0
      %378 = vmatprep.subr.bf16.mxu0 0
      %379 = vmatpush1.bf16.msra.mxu0 0
      %380 = vmatprep.subr.bf16.mxu0 0
      %381 = vmatpush1.bf16.msra.mxu0 0
      %382 = vmatprep.subr.bf16.mxu0 0
      %383 = vmatpush1.bf16.msra.mxu0 0
      %384 = vmatprep.subr.bf16.mxu0 0
      %385 = vmatpush1.bf16.msra.mxu0 0
      %386 = vmatprep.subr.bf16.mxu0 0
      %387 = vmatpush1.bf16.msra.mxu0 0
      %388 = vmatprep.subr.bf16.mxu0 0
      %389 = vmatpush1.bf16.msra.mxu0 0
      %390 = vmatprep.subr.bf16.mxu0 0
      %391 = vmatpush1.bf16.msra.mxu0 0
      %392 = vmatprep.subr.bf16.mxu0 0
      %393 = vmatpush1.bf16.msra.mxu0 %v376
      %394 = vmatprep.subr.bf16.mxu0 0
      %395 = vmatpush2.bf16.msra.mxu0 0
      %396 = vmatprep.subr.bf16.mxu0 0
      %397 = vmatpush2.bf16.msra.mxu0 0
      %398 = vmatprep.subr.bf16.mxu0 0
      %399 = vmatpush2.bf16.msra.mxu0 0
      %400 = vmatprep.subr.bf16.mxu0 0
      %401 = vmatpush2.bf16.msra.mxu0 0
      %402 = vmatprep.subr.bf16.mxu0 0
      %403 = vmatpush2.bf16.msra.mxu0 0
      %404 = vmatprep.subr.bf16.mxu0 0
      %405 = vmatpush2.bf16.msra.mxu0 0
      %406 = vmatprep.subr.bf16.mxu0 0
      %407 = vmatpush2.bf16.msra.mxu0 0
      %408 = vmatprep.subr.bf16.mxu0 0
      %409 = vmatpush2.bf16.msra.mxu0 0
      %410 = vmatprep.mubr.bf16.mxu0 0
      %411 = vmatmul.mubr.bf16.gmra.mxu0 %v361
      %v412 = vpop.f32.mrf.mxu0
      %v413 = vadd.f32 %v323, %v412
      %v414 = vpop.f32.mrf.mxu0
      %v415 = vpop.f32.mrf.mxu0
      %v416 = vadd.f32 %v326, %v415
      %v417 = vpop.f32.mrf.mxu0
      %418 = vmatprep.mubr.bf16.mxu0 0
      %419 = vmatmul.mubr.bf16.gmra.mxu0 %v364
      %v420 = vpop.f32.mrf.mxu0
      %v421 = vadd.f32 %v331, %v420
      %v422 = vpop.f32.mrf.mxu0
      %v423 = vpop.f32.mrf.mxu0
      %v424 = vadd.f32 %v334, %v423
      %v425 = vpop.f32.mrf.mxu0
      %426 = vmatprep.mubr.bf16.mxu0 0
      %427 = vmatmul.mubr.bf16.gmra.mxu0 %v367
      %v428 = vpop.f32.mrf.mxu0
      %v429 = vadd.f32 %v339, %v428
      %v430 = vpop.f32.mrf.mxu0
      %v431 = vpop.f32.mrf.mxu0
      %v432 = vadd.f32 %v342, %v431
      %v433 = vpop.f32.mrf.mxu0
      %434 = vmatprep.mubr.bf16.mxu0 0
      %435 = vmatmul.mubr.bf16.gmra.mxu0 %v370
      %v436 = vpop.f32.mrf.mxu0
      %v437 = vadd.f32 %v347, %v436
      %v438 = vpop.f32.mrf.mxu0
      %v439 = vpop.f32.mrf.mxu0
      %v440 = vadd.f32 %v350, %v439
      %v441 = vpop.f32.mrf.mxu0
      %442 = vmatprep.mubr.bf16.mxu0 0
      %443 = vmatmul.mubr.bf16.gmra.mxu0 %v373
      %v444 = vpop.f32.mrf.mxu0
      %v445 = vadd.f32 %v355, %v444
      %v446 = vpop.f32.mrf.mxu0
      %v447 = vpop.f32.mrf.mxu0
      %v448 = vpop.f32.mrf.mxu0
      %449 = vdwg.mxu0
      %v450 = vld [vmem:[%s206] sm:$0xf]
      %v451 = vld [vmem:[%s206 + $0x4] sm:$0xf]
      %v452 = vld [vmem:[%s206 + $0x8] sm:$0xf]
      %v453 = vld [vmem:[%s206 + $0xc] sm:$0xf]
      %v454 = vld [vmem:[%s206 + $0x10] sm:$0xf]
      %v455 = vld [vmem:[%s206 + $0x14] sm:$0xf]
      %v456 = vld [vmem:[%s206 + $0x18] sm:$0xf]
      %v457 = vld [vmem:[%s206 + $0x1c] sm:$0xf]
      %v458 = vld [vmem:[%s206 + $0x20] sm:$0xf]
      %v459 = vld [vmem:[%s206 + $0x24] sm:$0x1]
      %s460 = scalar_lea.vmem %s210, 4
      %v461 = vld [vmem:[%s460] sm:$0x3]
      %v472 = vunpack.c.l.b16 %v450
      %v473 = vunpack.c.l.b16 %v451
      %v474 = vunpack.c.l.b16 %v452
      %v475 = vunpack.c.l.b16 %v453
      %v476 = vunpack.c.l.b16 %v454
      %v477 = vunpack.c.l.b16 %v455
      %v478 = vunpack.c.l.b16 %v456
      %v479 = vunpack.c.l.b16 %v457
      %v480 = vunpack.c.l.b16 %v458
      %v481 = vunpack.c.l.b16 %v459
      %v482 = vpack.c.b16 %v473, %v472
      %v483 = vpack.c.b16 %v475, %v474
      %v484 = vpack.c.b16 %v477, %v476
      %v485 = vpack.c.b16 %v479, %v478
      %v486 = vpack.c.b16 %v481, %v480
      %vm487 = vsmask.f32 7424
      %v489 = vshrl.u32 %v482, 16
      %v491 = vshll.u32 %v482, 16
      %v493 = vrot.slane %v491, 1
      %v494 = vor.u32 %v489, %v493
      %v496 = vshll.u32 %v483, 16
      %v498 = vrot.slane %v496, 1
      %v499 = vsel %vm487, %v494, %v498
      %v500 = vshrl.u32 %v483, 16
      %v502 = vor.u32 %v500, %v498
      %v504 = vshll.u32 %v484, 16
      %v506 = vrot.slane %v504, 1
      %v507 = vsel %vm487, %v502, %v506
      %v508 = vshrl.u32 %v484, 16
      %v510 = vor.u32 %v508, %v506
      %v512 = vshll.u32 %v485, 16
      %v514 = vrot.slane %v512, 1
      %v515 = vsel %vm487, %v510, %v514
      %v516 = vshrl.u32 %v485, 16
      %v518 = vor.u32 %v516, %v514
      %v520 = vshll.u32 %v486, 16
      %v522 = vrot.slane %v520, 1
      %v523 = vsel %vm487, %v518, %v522
      %v524 = vshrl.u32 %v486, 16
      %v526 = vor.u32 %v524, %v522
      %v528 = vsel %vm268, %v499, 0
      %v531 = vsel %vm268, %v507, 0
      %v534 = vsel %vm268, %v515, 0
      %v537 = vsel %vm268, %v523, 0
      %v540 = vsel %vm268, %v526, 0
      %v543 = vsel %vm284, %v461, 0
      %545 = vmatprep.subr.bf16.mxu0 0
      %546 = vmatpush1.bf16.msra.mxu0 0
      %547 = vmatprep.subr.bf16.mxu0 0
      %548 = vmatpush1.bf16.msra.mxu0 0
      %549 = vmatprep.subr.bf16.mxu0 0
      %550 = vmatpush1.bf16.msra.mxu0 0
      %551 = vmatprep.subr.bf16.mxu0 0
      %552 = vmatpush1.bf16.msra.mxu0 0
      %553 = vmatprep.subr.bf16.mxu0 0
      %554 = vmatpush1.bf16.msra.mxu0 0
      %555 = vmatprep.subr.bf16.mxu0 0
      %556 = vmatpush1.bf16.msra.mxu0 0
      %557 = vmatprep.subr.bf16.mxu0 0
      %558 = vmatpush1.bf16.msra.mxu0 0
      %559 = vmatprep.subr.bf16.mxu0 0
      %560 = vmatpush1.bf16.msra.mxu0 %v543
      %561 = vmatprep.subr.bf16.mxu0 0
      %562 = vmatpush2.bf16.msra.mxu0 0
      %563 = vmatprep.subr.bf16.mxu0 0
      %564 = vmatpush2.bf16.msra.mxu0 0
      %565 = vmatprep.subr.bf16.mxu0 0
      %566 = vmatpush2.bf16.msra.mxu0 0
      %567 = vmatprep.subr.bf16.mxu0 0
      %568 = vmatpush2.bf16.msra.mxu0 0
      %569 = vmatprep.subr.bf16.mxu0 0
      %570 = vmatpush2.bf16.msra.mxu0 0
      %571 = vmatprep.subr.bf16.mxu0 0
      %572 = vmatpush2.bf16.msra.mxu0 0
      %573 = vmatprep.subr.bf16.mxu0 0
      %574 = vmatpush2.bf16.msra.mxu0 0
      %575 = vmatprep.subr.bf16.mxu0 0
      %576 = vmatpush2.bf16.msra.mxu0 0
      %577 = vmatprep.mubr.bf16.mxu0 0
      %578 = vmatmul.mubr.bf16.gmra.mxu0 %v528
      %v579 = vpop.f32.mrf.mxu0
      %v580 = vadd.f32 0.0, %v579
      %v581 = vpop.f32.mrf.mxu0
      %v582 = vpop.f32.mrf.mxu0
      %v583 = vadd.f32 0.0, %v582
      %v584 = vpop.f32.mrf.mxu0
      %585 = vmatprep.mubr.bf16.mxu0 0
      %586 = vmatmul.mubr.bf16.gmra.mxu0 %v531
      %v587 = vpop.f32.mrf.mxu0
      %v588 = vadd.f32 0.0, %v587
      %v589 = vpop.f32.mrf.mxu0
      %v590 = vpop.f32.mrf.mxu0
      %v591 = vadd.f32 0.0, %v590
      %v592 = vpop.f32.mrf.mxu0
      %593 = vmatprep.mubr.bf16.mxu0 0
      %594 = vmatmul.mubr.bf16.gmra.mxu0 %v534
      %v595 = vpop.f32.mrf.mxu0
      %v596 = vadd.f32 0.0, %v595
      %v597 = vpop.f32.mrf.mxu0
      %v598 = vpop.f32.mrf.mxu0
      %v599 = vadd.f32 0.0, %v598
      %v600 = vpop.f32.mrf.mxu0
      %601 = vmatprep.mubr.bf16.mxu0 0
      %602 = vmatmul.mubr.bf16.gmra.mxu0 %v537
      %v603 = vpop.f32.mrf.mxu0
      %v604 = vadd.f32 0.0, %v603
      %v605 = vpop.f32.mrf.mxu0
      %v606 = vpop.f32.mrf.mxu0
      %v607 = vadd.f32 0.0, %v606
      %v608 = vpop.f32.mrf.mxu0
      %609 = vmatprep.mubr.bf16.mxu0 0
      %610 = vmatmul.mubr.bf16.gmra.mxu0 %v540
      %v611 = vpop.f32.mrf.mxu0
      %v612 = vadd.f32 0.0, %v611
      %v613 = vpop.f32.mrf.mxu0
      %v614 = vpop.f32.mrf.mxu0
      %v615 = vpop.f32.mrf.mxu0
      %616 = vdwg.mxu0
      %v617 = vadd.f32 %v413, %v580
      %v618 = vadd.f32 %v416, %v583
      %v619 = vadd.f32 %v421, %v588
      %v620 = vadd.f32 %v424, %v591
      %v621 = vadd.f32 %v429, %v596
      %v622 = vadd.f32 %v432, %v599
      %v623 = vadd.f32 %v437, %v604
      %v624 = vadd.f32 %v440, %v607
      %v625 = vadd.f32 %v445, %v612
      %s626 = scalar_lea.vmem %s210, 6
      %v627 = vld [vmem:[%s626] sm:$0x3]
      %628 = vrot.lane.b32.xlu0 %v253, 120
      %v629 = vpop.permute.xlu0 %628
      %630 = vrot.lane.b32.xlu0 %v254, 120
      %v631 = vpop.permute.xlu0 %630
      %632 = vrot.lane.b32.xlu0 %v255, 120
      %v633 = vpop.permute.xlu0 %632
      %634 = vrot.lane.b32.xlu0 %v256, 120
      %v635 = vpop.permute.xlu0 %634
      %636 = vrot.lane.b32.xlu0 %v257, 120
      %v637 = vpop.permute.xlu0 %636
      %v639 = vsel %vm268, %v629, 0
      %v642 = vsel %vm268, %v631, 0
      %v645 = vsel %vm268, %v633, 0
      %v648 = vsel %vm268, %v635, 0
      %v651 = vsel %vm268, %v637, 0
      %v654 = vsel %vm284, %v627, 0
      %656 = vmatprep.subr.bf16.mxu0 0
      %657 = vmatpush1.bf16.msra.mxu0 0
      %658 = vmatprep.subr.bf16.mxu0 0
      %659 = vmatpush1.bf16.msra.mxu0 0
      %660 = vmatprep.subr.bf16.mxu0 0
      %661 = vmatpush1.bf16.msra.mxu0 0
      %662 = vmatprep.subr.bf16.mxu0 0
      %663 = vmatpush1.bf16.msra.mxu0 0
      %664 = vmatprep.subr.bf16.mxu0 0
      %665 = vmatpush1.bf16.msra.mxu0 0
      %666 = vmatprep.subr.bf16.mxu0 0
      %667 = vmatpush1.bf16.msra.mxu0 0
      %668 = vmatprep.subr.bf16.mxu0 0
      %669 = vmatpush1.bf16.msra.mxu0 0
      %670 = vmatprep.subr.bf16.mxu0 0
      %671 = vmatpush1.bf16.msra.mxu0 %v654
      %672 = vmatprep.subr.bf16.mxu0 0
      %673 = vmatpush2.bf16.msra.mxu0 0
      %674 = vmatprep.subr.bf16.mxu0 0
      %675 = vmatpush2.bf16.msra.mxu0 0
      %676 = vmatprep.subr.bf16.mxu0 0
      %677 = vmatpush2.bf16.msra.mxu0 0
      %678 = vmatprep.subr.bf16.mxu0 0
      %679 = vmatpush2.bf16.msra.mxu0 0
      %680 = vmatprep.subr.bf16.mxu0 0
      %681 = vmatpush2.bf16.msra.mxu0 0
      %682 = vmatprep.subr.bf16.mxu0 0
      %683 = vmatpush2.bf16.msra.mxu0 0
      %684 = vmatprep.subr.bf16.mxu0 0
      %685 = vmatpush2.bf16.msra.mxu0 0
      %686 = vmatprep.subr.bf16.mxu0 0
      %687 = vmatpush2.bf16.msra.mxu0 0
      %688 = vmatprep.mubr.bf16.mxu0 0
      %689 = vmatmul.mubr.bf16.gmra.mxu0 %v639
      %v690 = vpop.f32.mrf.mxu0
      %v691 = vadd.f32 0.0, %v690
      %v692 = vpop.f32.mrf.mxu0
      %v693 = vpop.f32.mrf.mxu0
      %v694 = vadd.f32 0.0, %v693
      %v695 = vpop.f32.mrf.mxu0
      %696 = vmatprep.mubr.bf16.mxu0 0
      %697 = vmatmul.mubr.bf16.gmra.mxu0 %v642
      %v698 = vpop.f32.mrf.mxu0
      %v699 = vadd.f32 0.0, %v698
      %v700 = vpop.f32.mrf.mxu0
      %v701 = vpop.f32.mrf.mxu0
      %v702 = vadd.f32 0.0, %v701
      %v703 = vpop.f32.mrf.mxu0
      %704 = vmatprep.mubr.bf16.mxu0 0
      %705 = vmatmul.mubr.bf16.gmra.mxu0 %v645
      %v706 = vpop.f32.mrf.mxu0
      %v707 = vadd.f32 0.0, %v706
      %v708 = vpop.f32.mrf.mxu0
      %v709 = vpop.f32.mrf.mxu0
      %v710 = vadd.f32 0.0, %v709
      %v711 = vpop.f32.mrf.mxu0
      %712 = vmatprep.mubr.bf16.mxu0 0
      %713 = vmatmul.mubr.bf16.gmra.mxu0 %v648
      %v714 = vpop.f32.mrf.mxu0
      %v715 = vadd.f32 0.0, %v714
      %v716 = vpop.f32.mrf.mxu0
      %v717 = vpop.f32.mrf.mxu0
      %v718 = vadd.f32 0.0, %v717
      %v719 = vpop.f32.mrf.mxu0
      %720 = vmatprep.mubr.bf16.mxu0 0
      %721 = vmatmul.mubr.bf16.gmra.mxu0 %v651
      %v722 = vpop.f32.mrf.mxu0
      %v723 = vadd.f32 0.0, %v722
      %v724 = vpop.f32.mrf.mxu0
      %v725 = vpop.f32.mrf.mxu0
      %v726 = vpop.f32.mrf.mxu0
      %727 = vdwg.mxu0
      %v728 = vadd.f32 %v617, %v691
      %v729 = vadd.f32 %v618, %v694
      %v730 = vadd.f32 %v619, %v699
      %v731 = vadd.f32 %v620, %v702
      %v732 = vadd.f32 %v621, %v707
      %v733 = vadd.f32 %v622, %v710
      %v734 = vadd.f32 %v623, %v715
      %v735 = vadd.f32 %v624, %v718
      %v736 = vadd.f32 %v625, %v723
      %s737 = scalar_lea.vmem %s210, 8
      %v738 = vld [vmem:[%s737] sm:$0x3]
      %739 = vrot.lane.b32.xlu0 %v253, 116
      %v740 = vpop.permute.xlu0 %739
      %741 = vrot.lane.b32.xlu0 %v254, 116
      %v742 = vpop.permute.xlu0 %741
      %743 = vrot.lane.b32.xlu0 %v255, 116
      %v744 = vpop.permute.xlu0 %743
      %745 = vrot.lane.b32.xlu0 %v256, 116
      %v746 = vpop.permute.xlu0 %745
      %747 = vrot.lane.b32.xlu0 %v257, 116
      %v748 = vpop.permute.xlu0 %747
      %v750 = vsel %vm268, %v740, 0
      %v753 = vsel %vm268, %v742, 0
      %v756 = vsel %vm268, %v744, 0
      %v759 = vsel %vm268, %v746, 0
      %v762 = vsel %vm268, %v748, 0
      %v765 = vsel %vm284, %v738, 0
      %767 = vmatprep.subr.bf16.mxu0 0
      %768 = vmatpush1.bf16.msra.mxu0 0
      %769 = vmatprep.subr.bf16.mxu0 0
      %770 = vmatpush1.bf16.msra.mxu0 0
      %771 = vmatprep.subr.bf16.mxu0 0
      %772 = vmatpush1.bf16.msra.mxu0 0
      %773 = vmatprep.subr.bf16.mxu0 0
      %774 = vmatpush1.bf16.msra.mxu0 0
      %775 = vmatprep.subr.bf16.mxu0 0
      %776 = vmatpush1.bf16.msra.mxu0 0
      %777 = vmatprep.subr.bf16.mxu0 0
      %778 = vmatpush1.bf16.msra.mxu0 0
      %779 = vmatprep.subr.bf16.mxu0 0
      %780 = vmatpush1.bf16.msra.mxu0 0
      %781 = vmatprep.subr.bf16.mxu0 0
      %782 = vmatpush1.bf16.msra.mxu0 %v765
      %783 = vmatprep.subr.bf16.mxu0 0
      %784 = vmatpush2.bf16.msra.mxu0 0
      %785 = vmatprep.subr.bf16.mxu0 0
      %786 = vmatpush2.bf16.msra.mxu0 0
      %787 = vmatprep.subr.bf16.mxu0 0
      %788 = vmatpush2.bf16.msra.mxu0 0
      %789 = vmatprep.subr.bf16.mxu0 0
      %790 = vmatpush2.bf16.msra.mxu0 0
      %791 = vmatprep.subr.bf16.mxu0 0
      %792 = vmatpush2.bf16.msra.mxu0 0
      %793 = vmatprep.subr.bf16.mxu0 0
      %794 = vmatpush2.bf16.msra.mxu0 0
      %795 = vmatprep.subr.bf16.mxu0 0
      %796 = vmatpush2.bf16.msra.mxu0 0
      %797 = vmatprep.subr.bf16.mxu0 0
      %798 = vmatpush2.bf16.msra.mxu0 0
      %799 = vmatprep.mubr.bf16.mxu0 0
      %800 = vmatmul.mubr.bf16.gmra.mxu0 %v750
      %v801 = vpop.f32.mrf.mxu0
      %v802 = vadd.f32 0.0, %v801
      %v803 = vpop.f32.mrf.mxu0
      %v804 = vpop.f32.mrf.mxu0
      %v805 = vadd.f32 0.0, %v804
      %v806 = vpop.f32.mrf.mxu0
      %807 = vmatprep.mubr.bf16.mxu0 0
      %808 = vmatmul.mubr.bf16.gmra.mxu0 %v753
      %v809 = vpop.f32.mrf.mxu0
      %v810 = vadd.f32 0.0, %v809
      %v811 = vpop.f32.mrf.mxu0
      %v812 = vpop.f32.mrf.mxu0
      %v813 = vadd.f32 0.0, %v812
      %v814 = vpop.f32.mrf.mxu0
      %815 = vmatprep.mubr.bf16.mxu0 0
      %816 = vmatmul.mubr.bf16.gmra.mxu0 %v756
      %v817 = vpop.f32.mrf.mxu0
      %v818 = vadd.f32 0.0, %v817
      %v819 = vpop.f32.mrf.mxu0
      %v820 = vpop.f32.mrf.mxu0
      %v821 = vadd.f32 0.0, %v820
      %v822 = vpop.f32.mrf.mxu0
      %823 = vmatprep.mubr.bf16.mxu0 0
      %824 = vmatmul.mubr.bf16.gmra.mxu0 %v759
      %v825 = vpop.f32.mrf.mxu0
      %v826 = vadd.f32 0.0, %v825
      %v827 = vpop.f32.mrf.mxu0
      %v828 = vpop.f32.mrf.mxu0
      %v829 = vadd.f32 0.0, %v828
      %v830 = vpop.f32.mrf.mxu0
      %831 = vmatprep.mubr.bf16.mxu0 0
      %832 = vmatmul.mubr.bf16.gmra.mxu0 %v762
      %v833 = vpop.f32.mrf.mxu0
      %v834 = vadd.f32 0.0, %v833
      %v835 = vpop.f32.mrf.mxu0
      %v836 = vpop.f32.mrf.mxu0
      %v837 = vpop.f32.mrf.mxu0
      %838 = vdwg.mxu0
      %v839 = vadd.f32 %v728, %v802
      %v840 = vadd.f32 %v729, %v805
      %v841 = vadd.f32 %v730, %v810
      %v842 = vadd.f32 %v731, %v813
      %v843 = vadd.f32 %v732, %v818
      %v844 = vadd.f32 %v733, %v821
      %v845 = vadd.f32 %v734, %v826
      %v846 = vadd.f32 %v735, %v829
      %v847 = vadd.f32 %v736, %v834
      %s848 = scalar_lea.vmem %s210, 10
      %v849 = vld [vmem:[%s848] sm:$0x3]
      %850 = vrot.lane.b32.xlu0 %v499, 120
      %v851 = vpop.permute.xlu0 %850
      %852 = vrot.lane.b32.xlu0 %v507, 120
      %v853 = vpop.permute.xlu0 %852
      %854 = vrot.lane.b32.xlu0 %v515, 120
      %v855 = vpop.permute.xlu0 %854
      %856 = vrot.lane.b32.xlu0 %v523, 120
      %v857 = vpop.permute.xlu0 %856
      %858 = vrot.lane.b32.xlu0 %v526, 120
      %v859 = vpop.permute.xlu0 %858
      %v861 = vsel %vm268, %v851, 0
      %v864 = vsel %vm268, %v853, 0
      %v867 = vsel %vm268, %v855, 0
      %v870 = vsel %vm268, %v857, 0
      %v873 = vsel %vm268, %v859, 0
      %v876 = vsel %vm284, %v849, 0
      %878 = vmatprep.subr.bf16.mxu0 0
      %879 = vmatpush1.bf16.msra.mxu0 0
      %880 = vmatprep.subr.bf16.mxu0 0
      %881 = vmatpush1.bf16.msra.mxu0 0
      %882 = vmatprep.subr.bf16.mxu0 0
      %883 = vmatpush1.bf16.msra.mxu0 0
      %884 = vmatprep.subr.bf16.mxu0 0
      %885 = vmatpush1.bf16.msra.mxu0 0
      %886 = vmatprep.subr.bf16.mxu0 0
      %887 = vmatpush1.bf16.msra.mxu0 0
      %888 = vmatprep.subr.bf16.mxu0 0
      %889 = vmatpush1.bf16.msra.mxu0 0
      %890 = vmatprep.subr.bf16.mxu0 0
      %891 = vmatpush1.bf16.msra.mxu0 0
      %892 = vmatprep.subr.bf16.mxu0 0
      %893 = vmatpush1.bf16.msra.mxu0 %v876
      %894 = vmatprep.subr.bf16.mxu0 0
      %895 = vmatpush2.bf16.msra.mxu0 0
      %896 = vmatprep.subr.bf16.mxu0 0
      %897 = vmatpush2.bf16.msra.mxu0 0
      %898 = vmatprep.subr.bf16.mxu0 0
      %899 = vmatpush2.bf16.msra.mxu0 0
      %900 = vmatprep.subr.bf16.mxu0 0
      %901 = vmatpush2.bf16.msra.mxu0 0
      %902 = vmatprep.subr.bf16.mxu0 0
      %903 = vmatpush2.bf16.msra.mxu0 0
      %904 = vmatprep.subr.bf16.mxu0 0
      %905 = vmatpush2.bf16.msra.mxu0 0
      %906 = vmatprep.subr.bf16.mxu0 0
      %907 = vmatpush2.bf16.msra.mxu0 0
      %908 = vmatprep.subr.bf16.mxu0 0
      %909 = vmatpush2.bf16.msra.mxu0 0
      %910 = vmatprep.mubr.bf16.mxu0 0
      %911 = vmatmul.mubr.bf16.gmra.mxu0 %v861
      %v912 = vpop.f32.mrf.mxu0
      %v913 = vadd.f32 0.0, %v912
      %v914 = vpop.f32.mrf.mxu0
      %v915 = vpop.f32.mrf.mxu0
      %v916 = vadd.f32 0.0, %v915
      %v917 = vpop.f32.mrf.mxu0
      %918 = vmatprep.mubr.bf16.mxu0 0
      %919 = vmatmul.mubr.bf16.gmra.mxu0 %v864
      %v920 = vpop.f32.mrf.mxu0
      %v921 = vadd.f32 0.0, %v920
      %v922 = vpop.f32.mrf.mxu0
      %v923 = vpop.f32.mrf.mxu0
      %v924 = vadd.f32 0.0, %v923
      %v925 = vpop.f32.mrf.mxu0
      %926 = vmatprep.mubr.bf16.mxu0 0
      %927 = vmatmul.mubr.bf16.gmra.mxu0 %v867
      %v928 = vpop.f32.mrf.mxu0
      %v929 = vadd.f32 0.0, %v928
      %v930 = vpop.f32.mrf.mxu0
      %v931 = vpop.f32.mrf.mxu0
      %v932 = vadd.f32 0.0, %v931
      %v933 = vpop.f32.mrf.mxu0
      %934 = vmatprep.mubr.bf16.mxu0 0
      %935 = vmatmul.mubr.bf16.gmra.mxu0 %v870
      %v936 = vpop.f32.mrf.mxu0
      %v937 = vadd.f32 0.0, %v936
      %v938 = vpop.f32.mrf.mxu0
      %v939 = vpop.f32.mrf.mxu0
      %v940 = vadd.f32 0.0, %v939
      %v941 = vpop.f32.mrf.mxu0
      %942 = vmatprep.mubr.bf16.mxu0 0
      %943 = vmatmul.mubr.bf16.gmra.mxu0 %v873
      %v944 = vpop.f32.mrf.mxu0
      %v945 = vadd.f32 0.0, %v944
      %v946 = vpop.f32.mrf.mxu0
      %v947 = vpop.f32.mrf.mxu0
      %v948 = vpop.f32.mrf.mxu0
      %949 = vdwg.mxu0
      %v950 = vadd.f32 %v839, %v913
      %v951 = vadd.f32 %v840, %v916
      %v952 = vadd.f32 %v841, %v921
      %v953 = vadd.f32 %v842, %v924
      %v954 = vadd.f32 %v843, %v929
      %v955 = vadd.f32 %v844, %v932
      %v956 = vadd.f32 %v845, %v937
      %v957 = vadd.f32 %v846, %v940
      %v958 = vadd.f32 %v847, %v945
      %v959 = vld [vmem:[%s206 + $0x4] sm:$0xf]
      %v960 = vld [vmem:[%s206 + $0x8] sm:$0xf]
      %v961 = vld [vmem:[%s206 + $0xc] sm:$0xf]
      %v962 = vld [vmem:[%s206 + $0x10] sm:$0xf]
      %v963 = vld [vmem:[%s206 + $0x14] sm:$0xf]
      %v964 = vld [vmem:[%s206 + $0x18] sm:$0xf]
      %v965 = vld [vmem:[%s206 + $0x1c] sm:$0xf]
      %v966 = vld [vmem:[%s206 + $0x20] sm:$0xf]
      %v967 = vld [vmem:[%s206 + $0x24] sm:$0xf]
      %v968 = vld [vmem:[%s206 + $0x28] sm:$0x1]
      %s969 = scalar_lea.vmem %s210, 12
      %v970 = vld [vmem:[%s969] sm:$0x3]
      %v981 = vunpack.c.l.b16 %v959
      %v982 = vunpack.c.l.b16 %v960
      %v983 = vunpack.c.l.b16 %v961
      %v984 = vunpack.c.l.b16 %v962
      %v985 = vunpack.c.l.b16 %v963
      %v986 = vunpack.c.l.b16 %v964
      %v987 = vunpack.c.l.b16 %v965
      %v988 = vunpack.c.l.b16 %v966
      %v989 = vunpack.c.l.b16 %v967
      %v990 = vunpack.c.l.b16 %v968
      %v991 = vpack.c.b16 %v982, %v981
      %v992 = vpack.c.b16 %v984, %v983
      %v993 = vpack.c.b16 %v986, %v985
      %v994 = vpack.c.b16 %v988, %v987
      %v995 = vpack.c.b16 %v990, %v989
      %v997 = vshrl.u32 %v991, 16
      %v999 = vshll.u32 %v991, 16
      %v1001 = vrot.slane %v999, 1
      %v1002 = vor.u32 %v997, %v1001
      %v1004 = vshll.u32 %v992, 16
      %v1006 = vrot.slane %v1004, 1
      %v1007 = vsel %vm487, %v1002, %v1006
      %v1008 = vshrl.u32 %v992, 16
      %v1010 = vor.u32 %v1008, %v1006
      %v1012 = vshll.u32 %v993, 16
      %v1014 = vrot.slane %v1012, 1
      %v1015 = vsel %vm487, %v1010, %v1014
      %v1016 = vshrl.u32 %v993, 16
      %v1018 = vor.u32 %v1016, %v1014
      %v1020 = vshll.u32 %v994, 16
      %v1022 = vrot.slane %v1020, 1
      %v1023 = vsel %vm487, %v1018, %v1022
      %v1024 = vshrl.u32 %v994, 16
      %v1026 = vor.u32 %v1024, %v1022
      %v1028 = vshll.u32 %v995, 16
      %v1030 = vrot.slane %v1028, 1
      %v1031 = vsel %vm487, %v1026, %v1030
      %v1032 = vshrl.u32 %v995, 16
      %v1034 = vor.u32 %v1032, %v1030
      %v1036 = vsel %vm268, %v1007, 0
      %v1039 = vsel %vm268, %v1015, 0
      %v1042 = vsel %vm268, %v1023, 0
      %v1045 = vsel %vm268, %v1031, 0
      %v1048 = vsel %vm268, %v1034, 0
      %v1051 = vsel %vm284, %v970, 0
      %1053 = vmatprep.subr.bf16.mxu0 0
      %1054 = vmatpush1.bf16.msra.mxu0 0
      %1055 = vmatprep.subr.bf16.mxu0 0
      %1056 = vmatpush1.bf16.msra.mxu0 0
      %1057 = vmatprep.subr.bf16.mxu0 0
      %1058 = vmatpush1.bf16.msra.mxu0 0
      %1059 = vmatprep.subr.bf16.mxu0 0
      %1060 = vmatpush1.bf16.msra.mxu0 0
      %1061 = vmatprep.subr.bf16.mxu0 0
      %1062 = vmatpush1.bf16.msra.mxu0 0
      %1063 = vmatprep.subr.bf16.mxu0 0
      %1064 = vmatpush1.bf16.msra.mxu0 0
      %1065 = vmatprep.subr.bf16.mxu0 0
      %1066 = vmatpush1.bf16.msra.mxu0 0
      %1067 = vmatprep.subr.bf16.mxu0 0
      %1068 = vmatpush1.bf16.msra.mxu0 %v1051
      %1069 = vmatprep.subr.bf16.mxu0 0
      %1070 = vmatpush2.bf16.msra.mxu0 0
      %1071 = vmatprep.subr.bf16.mxu0 0
      %1072 = vmatpush2.bf16.msra.mxu0 0
      %1073 = vmatprep.subr.bf16.mxu0 0
      %1074 = vmatpush2.bf16.msra.mxu0 0
      %1075 = vmatprep.subr.bf16.mxu0 0
      %1076 = vmatpush2.bf16.msra.mxu0 0
      %1077 = vmatprep.subr.bf16.mxu0 0
      %1078 = vmatpush2.bf16.msra.mxu0 0
      %1079 = vmatprep.subr.bf16.mxu0 0
      %1080 = vmatpush2.bf16.msra.mxu0 0
      %1081 = vmatprep.subr.bf16.mxu0 0
      %1082 = vmatpush2.bf16.msra.mxu0 0
      %1083 = vmatprep.subr.bf16.mxu0 0
      %1084 = vmatpush2.bf16.msra.mxu0 0
      %1085 = vmatprep.mubr.bf16.mxu0 0
      %1086 = vmatmul.mubr.bf16.gmra.mxu0 %v1036
      %v1087 = vpop.f32.mrf.mxu0
      %v1088 = vadd.f32 0.0, %v1087
      %v1089 = vpop.f32.mrf.mxu0
      %v1090 = vpop.f32.mrf.mxu0
      %v1091 = vadd.f32 0.0, %v1090
      %v1092 = vpop.f32.mrf.mxu0
      %1093 = vmatprep.mubr.bf16.mxu0 0
      %1094 = vmatmul.mubr.bf16.gmra.mxu0 %v1039
      %v1095 = vpop.f32.mrf.mxu0
      %v1096 = vadd.f32 0.0, %v1095
      %v1097 = vpop.f32.mrf.mxu0
      %v1098 = vpop.f32.mrf.mxu0
      %v1099 = vadd.f32 0.0, %v1098
      %v1100 = vpop.f32.mrf.mxu0
      %1101 = vmatprep.mubr.bf16.mxu0 0
      %1102 = vmatmul.mubr.bf16.gmra.mxu0 %v1042
      %v1103 = vpop.f32.mrf.mxu0
      %v1104 = vadd.f32 0.0, %v1103
      %v1105 = vpop.f32.mrf.mxu0
      %v1106 = vpop.f32.mrf.mxu0
      %v1107 = vadd.f32 0.0, %v1106
      %v1108 = vpop.f32.mrf.mxu0
      %1109 = vmatprep.mubr.bf16.mxu0 0
      %1110 = vmatmul.mubr.bf16.gmra.mxu0 %v1045
      %v1111 = vpop.f32.mrf.mxu0
      %v1112 = vadd.f32 0.0, %v1111
      %v1113 = vpop.f32.mrf.mxu0
      %v1114 = vpop.f32.mrf.mxu0
      %v1115 = vadd.f32 0.0, %v1114
      %v1116 = vpop.f32.mrf.mxu0
      %1117 = vmatprep.mubr.bf16.mxu0 0
      %1118 = vmatmul.mubr.bf16.gmra.mxu0 %v1048
      %v1119 = vpop.f32.mrf.mxu0
      %v1120 = vadd.f32 0.0, %v1119
      %v1121 = vpop.f32.mrf.mxu0
      %v1122 = vpop.f32.mrf.mxu0
      %v1123 = vpop.f32.mrf.mxu0
      %1124 = vdwg.mxu0
      %v1125 = vadd.f32 %v950, %v1088
      %v1126 = vadd.f32 %v951, %v1091
      %v1127 = vadd.f32 %v952, %v1096
      %v1128 = vadd.f32 %v953, %v1099
      %v1129 = vadd.f32 %v954, %v1104
      %v1130 = vadd.f32 %v955, %v1107
      %v1131 = vadd.f32 %v956, %v1112
      %v1132 = vadd.f32 %v957, %v1115
      %v1133 = vadd.f32 %v958, %v1120
      %s1134 = scalar_lea.vmem %s210, 14
      %v1135 = vld [vmem:[%s1134] sm:$0x3]
      %1136 = vrot.lane.b32.xlu0 %v1007, 124
      %v1137 = vpop.permute.xlu0 %1136
      %1138 = vrot.lane.b32.xlu0 %v1015, 124
      %v1139 = vpop.permute.xlu0 %1138
      %1140 = vrot.lane.b32.xlu0 %v1023, 124
      %v1141 = vpop.permute.xlu0 %1140
      %1142 = vrot.lane.b32.xlu0 %v1031, 124
      %v1143 = vpop.permute.xlu0 %1142
      %1144 = vrot.lane.b32.xlu0 %v1034, 124
      %v1145 = vpop.permute.xlu0 %1144
      %v1147 = vsel %vm268, %v1137, 0
      %v1150 = vsel %vm268, %v1139, 0
      %v1153 = vsel %vm268, %v1141, 0
      %v1156 = vsel %vm268, %v1143, 0
      %v1159 = vsel %vm268, %v1145, 0
      %v1162 = vsel %vm284, %v1135, 0
      %1164 = vmatprep.subr.bf16.mxu0 0
      %1165 = vmatpush1.bf16.msra.mxu0 0
      %1166 = vmatprep.subr.bf16.mxu0 0
      %1167 = vmatpush1.bf16.msra.mxu0 0
      %1168 = vmatprep.subr.bf16.mxu0 0
      %1169 = vmatpush1.bf16.msra.mxu0 0
      %1170 = vmatprep.subr.bf16.mxu0 0
      %1171 = vmatpush1.bf16.msra.mxu0 0
      %1172 = vmatprep.subr.bf16.mxu0 0
      %1173 = vmatpush1.bf16.msra.mxu0 0
      %1174 = vmatprep.subr.bf16.mxu0 0
      %1175 = vmatpush1.bf16.msra.mxu0 0
      %1176 = vmatprep.subr.bf16.mxu0 0
      %1177 = vmatpush1.bf16.msra.mxu0 0
      %1178 = vmatprep.subr.bf16.mxu0 0
      %1179 = vmatpush1.bf16.msra.mxu0 %v1162
      %1180 = vmatprep.subr.bf16.mxu0 0
      %1181 = vmatpush2.bf16.msra.mxu0 0
      %1182 = vmatprep.subr.bf16.mxu0 0
      %1183 = vmatpush2.bf16.msra.mxu0 0
      %1184 = vmatprep.subr.bf16.mxu0 0
      %1185 = vmatpush2.bf16.msra.mxu0 0
      %1186 = vmatprep.subr.bf16.mxu0 0
      %1187 = vmatpush2.bf16.msra.mxu0 0
      %1188 = vmatprep.subr.bf16.mxu0 0
      %1189 = vmatpush2.bf16.msra.mxu0 0
      %1190 = vmatprep.subr.bf16.mxu0 0
      %1191 = vmatpush2.bf16.msra.mxu0 0
      %1192 = vmatprep.subr.bf16.mxu0 0
      %1193 = vmatpush2.bf16.msra.mxu0 0
      %1194 = vmatprep.subr.bf16.mxu0 0
      %1195 = vmatpush2.bf16.msra.mxu0 0
      %1196 = vmatprep.mubr.bf16.mxu0 0
      %1197 = vmatmul.mubr.bf16.gmra.mxu0 %v1147
      %v1198 = vpop.f32.mrf.mxu0
      %v1199 = vadd.f32 0.0, %v1198
      %v1200 = vpop.f32.mrf.mxu0
      %v1201 = vpop.f32.mrf.mxu0
      %v1202 = vadd.f32 0.0, %v1201
      %v1203 = vpop.f32.mrf.mxu0
      %1204 = vmatprep.mubr.bf16.mxu0 0
      %1205 = vmatmul.mubr.bf16.gmra.mxu0 %v1150
      %v1206 = vpop.f32.mrf.mxu0
      %v1207 = vadd.f32 0.0, %v1206
      %v1208 = vpop.f32.mrf.mxu0
      %v1209 = vpop.f32.mrf.mxu0
      %v1210 = vadd.f32 0.0, %v1209
      %v1211 = vpop.f32.mrf.mxu0
      %1212 = vmatprep.mubr.bf16.mxu0 0
      %1213 = vmatmul.mubr.bf16.gmra.mxu0 %v1153
      %v1214 = vpop.f32.mrf.mxu0
      %v1215 = vadd.f32 0.0, %v1214
      %v1216 = vpop.f32.mrf.mxu0
      %v1217 = vpop.f32.mrf.mxu0
      %v1218 = vadd.f32 0.0, %v1217
      %v1219 = vpop.f32.mrf.mxu0
      %1220 = vmatprep.mubr.bf16.mxu0 0
      %1221 = vmatmul.mubr.bf16.gmra.mxu0 %v1156
      %v1222 = vpop.f32.mrf.mxu0
      %v1223 = vadd.f32 0.0, %v1222
      %v1224 = vpop.f32.mrf.mxu0
      %v1225 = vpop.f32.mrf.mxu0
      %v1226 = vadd.f32 0.0, %v1225
      %v1227 = vpop.f32.mrf.mxu0
      %1228 = vmatprep.mubr.bf16.mxu0 0
      %1229 = vmatmul.mubr.bf16.gmra.mxu0 %v1159
      %v1230 = vpop.f32.mrf.mxu0
      %v1231 = vadd.f32 0.0, %v1230
      %v1232 = vpop.f32.mrf.mxu0
      %v1233 = vpop.f32.mrf.mxu0
      %v1234 = vpop.f32.mrf.mxu0
      %1235 = vdwg.mxu0
      %v1236 = vadd.f32 %v1125, %v1199
      %v1237 = vadd.f32 %v1126, %v1202
      %v1238 = vadd.f32 %v1127, %v1207
      %v1239 = vadd.f32 %v1128, %v1210
      %v1240 = vadd.f32 %v1129, %v1215
      %v1241 = vadd.f32 %v1130, %v1218
      %v1242 = vadd.f32 %v1131, %v1223
      %v1243 = vadd.f32 %v1132, %v1226
      %v1244 = vadd.f32 %v1133, %v1231
      %v1245 = vld [vmem:[%s206 + $0x4] sm:$0xe]
      %s1246 = scalar_lea.vmem %s210, 16
      %v1247 = vld [vmem:[%s1246] sm:$0x3]
      %v1249 = vunpack.c.l.b16 %v1245
      %v1250 = vpack.c.b16 %v982, %v1249
      %vm1251 = vcmask 1046528
      %v1252 = vrot.slane %v1250, 1
      %v1253 = vrot.slane %v992, 1
      %v1254 = vsel %vm1251, %v1252, %v1253
      %v1255 = vrot.slane %v993, 1
      %v1256 = vsel %vm1251, %v1253, %v1255
      %v1257 = vrot.slane %v994, 1
      %v1258 = vsel %vm1251, %v1255, %v1257
      %v1259 = vrot.slane %v995, 1
      %v1260 = vsel %vm1251, %v1257, %v1259
      %v1262 = vsel %vm268, %v1254, 0
      %v1265 = vsel %vm268, %v1256, 0
      %v1268 = vsel %vm268, %v1258, 0
      %v1271 = vsel %vm268, %v1260, 0
      %v1274 = vsel %vm268, %v1259, 0
      %v1277 = vsel %vm284, %v1247, 0
      %1279 = vmatprep.subr.bf16.mxu0 0
      %1280 = vmatpush1.bf16.msra.mxu0 0
      %1281 = vmatprep.subr.bf16.mxu0 0
      %1282 = vmatpush1.bf16.msra.mxu0 0
      %1283 = vmatprep.subr.bf16.mxu0 0
      %1284 = vmatpush1.bf16.msra.mxu0 0
      %1285 = vmatprep.subr.bf16.mxu0 0
      %1286 = vmatpush1.bf16.msra.mxu0 0
      %1287 = vmatprep.subr.bf16.mxu0 0
      %1288 = vmatpush1.bf16.msra.mxu0 0
      %1289 = vmatprep.subr.bf16.mxu0 0
      %1290 = vmatpush1.bf16.msra.mxu0 0
      %1291 = vmatprep.subr.bf16.mxu0 0
      %1292 = vmatpush1.bf16.msra.mxu0 0
      %1293 = vmatprep.subr.bf16.mxu0 0
      %1294 = vmatpush1.bf16.msra.mxu0 %v1277
      %1295 = vmatprep.subr.bf16.mxu0 0
      %1296 = vmatpush2.bf16.msra.mxu0 0
      %1297 = vmatprep.subr.bf16.mxu0 0
      %1298 = vmatpush2.bf16.msra.mxu0 0
      %1299 = vmatprep.subr.bf16.mxu0 0
      %1300 = vmatpush2.bf16.msra.mxu0 0
      %1301 = vmatprep.subr.bf16.mxu0 0
      %1302 = vmatpush2.bf16.msra.mxu0 0
      %1303 = vmatprep.subr.bf16.mxu0 0
      %1304 = vmatpush2.bf16.msra.mxu0 0
      %1305 = vmatprep.subr.bf16.mxu0 0
      %1306 = vmatpush2.bf16.msra.mxu0 0
      %1307 = vmatprep.subr.bf16.mxu0 0
      %1308 = vmatpush2.bf16.msra.mxu0 0
      %1309 = vmatprep.subr.bf16.mxu0 0
      %1310 = vmatpush2.bf16.msra.mxu0 0
      %1311 = vmatprep.mubr.bf16.mxu0 0
      %1312 = vmatmul.mubr.bf16.gmra.mxu0 %v1262
      %v1313 = vpop.f32.mrf.mxu0
      %v1314 = vadd.f32 0.0, %v1313
      %v1315 = vpop.f32.mrf.mxu0
      %v1316 = vpop.f32.mrf.mxu0
      %v1317 = vadd.f32 0.0, %v1316
      %v1318 = vpop.f32.mrf.mxu0
      %1319 = vmatprep.mubr.bf16.mxu0 0
      %1320 = vmatmul.mubr.bf16.gmra.mxu0 %v1265
      %v1321 = vpop.f32.mrf.mxu0
      %v1322 = vadd.f32 0.0, %v1321
      %v1323 = vpop.f32.mrf.mxu0
      %v1324 = vpop.f32.mrf.mxu0
      %v1325 = vadd.f32 0.0, %v1324
      %v1326 = vpop.f32.mrf.mxu0
      %1327 = vmatprep.mubr.bf16.mxu0 0
      %1328 = vmatmul.mubr.bf16.gmra.mxu0 %v1268
      %v1329 = vpop.f32.mrf.mxu0
      %v1330 = vadd.f32 0.0, %v1329
      %v1331 = vpop.f32.mrf.mxu0
      %v1332 = vpop.f32.mrf.mxu0
      %v1333 = vadd.f32 0.0, %v1332
      %v1334 = vpop.f32.mrf.mxu0
      %1335 = vmatprep.mubr.bf16.mxu0 0
      %1336 = vmatmul.mubr.bf16.gmra.mxu0 %v1271
      %v1337 = vpop.f32.mrf.mxu0
      %v1338 = vadd.f32 0.0, %v1337
      %v1339 = vpop.f32.mrf.mxu0
      %v1340 = vpop.f32.mrf.mxu0
      %v1341 = vadd.f32 0.0, %v1340
      %v1342 = vpop.f32.mrf.mxu0
      %1343 = vmatprep.mubr.bf16.mxu0 0
      %1344 = vmatmul.mubr.bf16.gmra.mxu0 %v1274
      %v1345 = vpop.f32.mrf.mxu0
      %v1346 = vadd.f32 0.0, %v1345
      %v1347 = vpop.f32.mrf.mxu0
      %v1348 = vpop.f32.mrf.mxu0
      %v1349 = vpop.f32.mrf.mxu0
      %1350 = vdwg.mxu0
      %v1351 = vadd.f32 %v1236, %v1314
      %v1352 = vadd.f32 %v1237, %v1317
      %v1353 = vadd.f32 %v1238, %v1322
      %v1354 = vadd.f32 %v1239, %v1325
      %v1355 = vadd.f32 %v1240, %v1330
      %v1356 = vadd.f32 %v1241, %v1333
      %v1357 = vadd.f32 %v1242, %v1338
      %v1358 = vadd.f32 %v1243, %v1341
      %v1359 = vadd.f32 %v1244, %v1346
      %v1360 = vld [vmem:[%s213] sm:$0x1]
      %v1362 = vlaneseq
      %v1363 = vshrl.u32 %v1362, 7
      %v1364 = vsub.s32 0, %v1363
      %v1365 = vrot.slane %v1360, %v1364
      %v1367 = vadd.f32 %v1351, %v1365
      %v1368 = vadd.f32 %v1352, %v1365
      %v1369 = vadd.f32 %v1353, %v1365
      %v1370 = vadd.f32 %v1354, %v1365
      %v1371 = vadd.f32 %v1355, %v1365
      %v1372 = vadd.f32 %v1356, %v1365
      %v1373 = vadd.f32 %v1357, %v1365
      %v1374 = vadd.f32 %v1358, %v1365
      %v1375 = vadd.f32 %v1359, %v1365
      %vm1376 = vcmp.ge.f32.partialorder %v1367, 0.0
      %vm1377 = vcmp.ge.f32.partialorder %v1368, 0.0
      %vm1378 = vcmp.ge.f32.partialorder %v1369, 0.0
      %vm1379 = vcmp.ge.f32.partialorder %v1370, 0.0
      %vm1380 = vcmp.ge.f32.partialorder %v1371, 0.0
      %vm1381 = vcmp.ge.f32.partialorder %v1372, 0.0
      %vm1382 = vcmp.ge.f32.partialorder %v1373, 0.0
      %vm1383 = vcmp.ge.f32.partialorder %v1374, 0.0
      %vm1384 = vcmp.ge.f32.partialorder %v1375, 0.0
      %v1385 = vmul.f32 %v1367, 0.2
      %v1386 = vmul.f32 %v1368, 0.2
      %v1387 = vmul.f32 %v1369, 0.2
      %v1388 = vmul.f32 %v1370, 0.2
      %v1389 = vmul.f32 %v1371, 0.2
      %v1390 = vmul.f32 %v1372, 0.2
      %v1391 = vmul.f32 %v1373, 0.2
      %v1392 = vmul.f32 %v1374, 0.2
      %v1393 = vmul.f32 %v1375, 0.2
      %v1394 = vsel %vm1376, %v1367, %v1385
      %v1395 = vsel %vm1377, %v1368, %v1386
      %v1396 = vsel %vm1378, %v1369, %v1387
      %v1397 = vsel %vm1379, %v1370, %v1388
      %v1398 = vsel %vm1380, %v1371, %v1389
      %v1399 = vsel %vm1381, %v1372, %v1390
      %v1400 = vsel %vm1382, %v1373, %v1391
      %v1401 = vsel %vm1383, %v1374, %v1392
      %v1402 = vsel %vm1384, %v1375, %v1393
      %v1403 = vpack.c.bf16 %v1395, %v1394
      %v1404 = vpack.c.bf16 %v1397, %v1396
      %v1405 = vpack.c.bf16 %v1399, %v1398
      %v1406 = vpack.c.bf16 %v1401, %v1400
      %v1407 = vpack.c.bf16 %v1402, %v1402
      %v1413 = vunpack.c.l.b16 %v1403
      %v1414 = vunpack.c.h.b16 %v1403
      %v1415 = vunpack.c.l.b16 %v1404
      %v1416 = vunpack.c.h.b16 %v1404
      %v1417 = vunpack.c.l.b16 %v1405
      %v1418 = vunpack.c.h.b16 %v1405
      %v1419 = vunpack.c.l.b16 %v1406
      %v1420 = vunpack.c.h.b16 %v1406
      %v1421 = vunpack.c.l.b16 %v1407
      %v1422 = vpack.c.b16 %v1413, %v1413
      %v1423 = vpack.c.b16 %v1414, %v1414
      %v1424 = vpack.c.b16 %v1415, %v1415
      %v1425 = vpack.c.b16 %v1416, %v1416
      %v1426 = vpack.c.b16 %v1417, %v1417
      %v1427 = vpack.c.b16 %v1418, %v1418
      %v1428 = vpack.c.b16 %v1419, %v1419
      %v1429 = vpack.c.b16 %v1420, %v1420
      %v1430 = vpack.c.b16 %v1421, %v1421
      %1440 = vst [vmem:[%s221] sm:$0xf] %v1422
      %1441 = vst [vmem:[%s221 + $0x4] sm:$0xf] %v1423
      %1442 = vst [vmem:[%s221 + $0x8] sm:$0xf] %v1424
      %1443 = vst [vmem:[%s221 + $0xc] sm:$0xf] %v1425
      %1444 = vst [vmem:[%s221 + $0x10] sm:$0xf] %v1426
      %1445 = vst [vmem:[%s221 + $0x14] sm:$0xf] %v1427
      %1446 = vst [vmem:[%s221 + $0x18] sm:$0xf] %v1428
      %1447 = vst [vmem:[%s221 + $0x1c] sm:$0xf] %v1429
      %1448 = vst [vmem:[%s221 + $0x20] sm:$0xf] %v1430
      %p1449 = scmp.lt.s32.totalorder %s18, 1
      %s1450 = scalar_select %p1449, %s18, 1
      %p1451 = scmp.lt.s32.totalorder %s19, 0
      %s1452 = scalar_select %p1451, %s19, 0
      %s1453 = smul.addr %s1450, 9
      %s1454 = sadd.s32 %s1452, %s1453
      %s1455 = smul.addr %s1454, 4
      %s1456 = scalar_lea.vmem %s3, %s1455
      // Predicated region
      $region33: #{dcgan_discriminator_forward.3} parent=31 // pred_check
        %p1457 = pneg %p124
      $region34: #{dcgan_discriminator_forward.3} parent=31 // pred_check_branch
        %1459 = sbr.rel (%p1457) target = $region36
      $region35: #{dcgan_discriminator_forward.3} parent=31 // pred_region
        _
      $region36: #{dcgan_discriminator_forward.3} parent=31 // pred_fallthru
        _
    $region32: #{dcgan_discriminator_forward.3} parent=5 // pred_fallthru
      _
    %p1460 = scmp.le.s32.totalorder 2, %s9
    // Predicated region
    $region37: #{dcgan_discriminator_forward.3} parent=5 // pred_check
      %p1461 = pneg %p1460
    $region38: #{dcgan_discriminator_forward.3} parent=5 // pred_check_branch
      %1463 = sbr.rel (%p1461) target = $region40
    $region39: #{dcgan_discriminator_forward.3} parent=5 // pred_region
      %s1464 = ssub.s32 %s9, 2
      // Predicated region
      $region41: #{dcgan_discriminator_forward.3} parent=39 // pred_check
        %p1465 = pneg %p130
      $region42: #{dcgan_discriminator_forward.3} parent=39 // pred_check_branch
        %1467 = sbr.rel (%p1465) target = $region44
      $region43: #{dcgan_discriminator_forward.3} parent=39 // pred_region
        %p1468 = scmp.lt.s32.totalorder %s20, 1
        %s1469 = scalar_select %p1468, %s20, 1
        %p1470 = scmp.lt.s32.totalorder %s21, 0
        %s1471 = scalar_select %p1470, %s21, 0
        %s1472 = smul.addr %s1469, 9
        %s1473 = sadd.s32 %s1471, %s1472
        %s1474 = smul.addr %s1473, 4
        %s1475 = scalar_lea.vmem %s3, %s1474
      $region44: #{dcgan_discriminator_forward.3} parent=39 // pred_fallthru
        _
    $region40: #{dcgan_discriminator_forward.3} parent=5 // pred_fallthru
      _
  $region6: #{dcgan_discriminator_forward.3} parent=0 // loop_footer
    %s13 = sadd.s32 1, %s9
  $region7: #{dcgan_discriminator_forward.3} parent=0 // loop_footer_branch
    %8 = sbr.rel target = $region3
  $region8: #{dcgan_discriminator_forward.3} parent=0 // loop_exit
    _

// kernel: dcgan_discriminator_forward.5
$region0: #{dcgan_discriminator_forward.5}
  #allocation0 [shape = 'u32[]', space=smem, size = 0x4, offset = 0x4, fixed_abs, tag = 'smem constant byte address 0x4 - core index']
  #allocation1 [shape = 'u32[144,128]{1,0:T(1,128)}', space=vmem, size = 0x12000, scoped, tag = 'internal scratch']
  %s0 = inlined_call_operand.vmem [shape: bf16[2,256], index: 0, kind: input, shape index: {}]
  %s1 = inlined_call_operand.vmem [shape: bf16[256,128], index: 1, kind: input, shape index: {}]
  %s2 = inlined_call_operand.vmem [shape: f32[1,128], index: 2, kind: input, shape index: {}]
  %s3 = inlined_call_operand.vmem [shape: f32[2,128], index: 3, kind: output, shape index: {}]
  %s4 = sld [smem:[#allocation0]]
  $region22: #{dcgan_discriminator_forward.5} parent=0
    _
  %s6 = ssub.s32 1, %s4
  %s7 = scalar_select 0, %s6, %s4
  // Predicated region
  $region2: #{dcgan_discriminator_forward.5} parent=0 // pred_check
    _
  $region3: #{dcgan_discriminator_forward.5} parent=0 // pred_check_branch
    %9 = sbr.rel (0) target = $region5
  $region4: #{dcgan_discriminator_forward.5} parent=0 // pred_region
    _
  $region5: #{dcgan_discriminator_forward.5} parent=0 // pred_fallthru
    _
  // Predicated region
  $region6: #{dcgan_discriminator_forward.5} parent=0 // pred_check
    _
  $region7: #{dcgan_discriminator_forward.5} parent=0 // pred_check_branch
    %11 = sbr.rel (0) target = $region9
  $region8: #{dcgan_discriminator_forward.5} parent=0 // pred_region
    _
  $region9: #{dcgan_discriminator_forward.5} parent=0 // pred_fallthru
    _
  // Predicated region
  $region10: #{dcgan_discriminator_forward.5} parent=0 // pred_check
    _
  $region11: #{dcgan_discriminator_forward.5} parent=0 // pred_check_branch
    %13 = sbr.rel (0) target = $region13
  $region12: #{dcgan_discriminator_forward.5} parent=0 // pred_region
    _
  $region13: #{dcgan_discriminator_forward.5} parent=0 // pred_fallthru
    _
  %v15 = vld [vmem:[%s0] sm:$0x3]
  %v16 = vld [vmem:[%s1] sm:$0xf]
  %v17 = vld [vmem:[%s1 + $0x4] sm:$0xf]
  %v18 = vld [vmem:[%s1 + $0x8] sm:$0xf]
  %v19 = vld [vmem:[%s1 + $0xc] sm:$0xf]
  %v20 = vld [vmem:[%s1 + $0x10] sm:$0xf]
  %v21 = vld [vmem:[%s1 + $0x14] sm:$0xf]
  %v22 = vld [vmem:[%s1 + $0x18] sm:$0xf]
  %v23 = vld [vmem:[%s1 + $0x1c] sm:$0xf]
  %v24 = vld [vmem:[%s1 + $0x20] sm:$0xf]
  %v25 = vld [vmem:[%s1 + $0x24] sm:$0xf]
  %v26 = vld [vmem:[%s1 + $0x28] sm:$0xf]
  %v27 = vld [vmem:[%s1 + $0x2c] sm:$0xf]
  %v28 = vld [vmem:[%s1 + $0x30] sm:$0xf]
  %v29 = vld [vmem:[%s1 + $0x34] sm:$0xf]
  %v30 = vld [vmem:[%s1 + $0x38] sm:$0xf]
  %v31 = vld [vmem:[%s1 + $0x3c] sm:$0xf]
  %v32 = vld [vmem:[%s1 + $0x40] sm:$0xf]
  %v33 = vld [vmem:[%s1 + $0x44] sm:$0xf]
  %v34 = vld [vmem:[%s1 + $0x48] sm:$0xf]
  %v35 = vld [vmem:[%s1 + $0x4c] sm:$0xf]
  %v36 = vld [vmem:[%s1 + $0x50] sm:$0xf]
  %v37 = vld [vmem:[%s1 + $0x54] sm:$0xf]
  %v38 = vld [vmem:[%s1 + $0x58] sm:$0xf]
  %v39 = vld [vmem:[%s1 + $0x5c] sm:$0xf]
  %v40 = vld [vmem:[%s1 + $0x60] sm:$0xf]
  %v41 = vld [vmem:[%s1 + $0x64] sm:$0xf]
  %v42 = vld [vmem:[%s1 + $0x68] sm:$0xf]
  %v43 = vld [vmem:[%s1 + $0x6c] sm:$0xf]
  %v44 = vld [vmem:[%s1 + $0x70] sm:$0xf]
  %v45 = vld [vmem:[%s1 + $0x74] sm:$0xf]
  %v46 = vld [vmem:[%s1 + $0x78] sm:$0xf]
  %v47 = vld [vmem:[%s1 + $0x7c] sm:$0xf]
  %v48 = vld [vmem:[%s2] sm:$0x1]
  %v50 = vlaneseq
  %v51 = vshrl.u32 %v50, 7
  %v52 = vsub.s32 0, %v51
  %v53 = vrot.slane %v48, %v52
  %v57 = vunpack.c.l.s4 1966171168
  %v58 = vunpack.c.0.s8 %v57
  %v59 = vlaneseq
  %v60 = vshrl.u32 %v59, 7
  %v61 = vsub.s32 %v58, %v60
  %v62 = vrot.slane %v15, %v61
  %v63 = vcombine.high %v62, %v62
  %v65 = vunpack.c.l.s4 1966171168
  %v66 = vunpack.c.0.s8 %v65
  %v67 = vlaneseq
  %v68 = vshrl.u32 %v67, 7
  %v69 = vsub.s32 %v66, %v68
  %v70 = vrot.slane %v62, %v69
  %v72 = vunpack.c.l.s4 1966171168
  %v73 = vunpack.c.0.s8 %v72
  %v74 = vlaneseq
  %v75 = vshrl.u32 %v74, 7
  %v76 = vsub.s32 %v73, %v75
  %v77 = vrot.slane %v63, %v76
  %v112 = vunpack.c.l.b16 %v16
  %v113 = vunpack.c.l.b16 %v17
  %v114 = vunpack.c.l.b16 %v18
  %v115 = vunpack.c.l.b16 %v19
  %v116 = vunpack.c.l.b16 %v20
  %v117 = vunpack.c.l.b16 %v21
  %v118 = vunpack.c.l.b16 %v22
  %v119 = vunpack.c.l.b16 %v23
  %v120 = vunpack.c.l.b16 %v24
  %v121 = vunpack.c.l.b16 %v25
  %v122 = vunpack.c.l.b16 %v26
  %v123 = vunpack.c.l.b16 %v27
  %v124 = vunpack.c.l.b16 %v28
  %v125 = vunpack.c.l.b16 %v29
  %v126 = vunpack.c.l.b16 %v30
  %v127 = vunpack.c.l.b16 %v31
  %v128 = vunpack.c.l.b16 %v32
  %v129 = vunpack.c.l.b16 %v33
  %v130 = vunpack.c.l.b16 %v34
  %v131 = vunpack.c.l.b16 %v35
  %v132 = vunpack.c.l.b16 %v36
  %v133 = vunpack.c.l.b16 %v37
  %v134 = vunpack.c.l.b16 %v38
  %v135 = vunpack.c.l.b16 %v39
  %v136 = vunpack.c.l.b16 %v40
  %v137 = vunpack.c.l.b16 %v41
  %v138 = vunpack.c.l.b16 %v42
  %v139 = vunpack.c.l.b16 %v43
  %v140 = vunpack.c.l.b16 %v44
  %v141 = vunpack.c.l.b16 %v45
  %v142 = vunpack.c.l.b16 %v46
  %v143 = vunpack.c.l.b16 %v47
  %v144 = vpack.c.b16 %v113, %v112
  %v145 = vpack.c.b16 %v115, %v114
  %v146 = vpack.c.b16 %v117, %v116
  %v147 = vpack.c.b16 %v119, %v118
  %v148 = vpack.c.b16 %v121, %v120
  %v149 = vpack.c.b16 %v123, %v122
  %v150 = vpack.c.b16 %v125, %v124
  %v151 = vpack.c.b16 %v127, %v126
  %v152 = vpack.c.b16 %v129, %v128
  %v153 = vpack.c.b16 %v131, %v130
  %v154 = vpack.c.b16 %v133, %v132
  %v155 = vpack.c.b16 %v135, %v134
  %v156 = vpack.c.b16 %v137, %v136
  %v157 = vpack.c.b16 %v139, %v138
  %v158 = vpack.c.b16 %v141, %v140
  %v159 = vpack.c.b16 %v143, %v142
  %176 = vmatprep.subr.bf16.mxu0 0
  %177 = vmatpush1.bf16.msra.mxu0 %v151
  %178 = vmatprep.subr.bf16.mxu0 0
  %179 = vmatpush1.bf16.msra.mxu0 %v150
  %180 = vmatprep.subr.bf16.mxu0 0
  %181 = vmatpush1.bf16.msra.mxu0 %v149
  %182 = vmatprep.subr.bf16.mxu0 0
  %183 = vmatpush1.bf16.msra.mxu0 %v148
  %184 = vmatprep.subr.bf16.mxu0 0
  %185 = vmatpush1.bf16.msra.mxu0 %v147
  %186 = vmatprep.subr.bf16.mxu0 0
  %187 = vmatpush1.bf16.msra.mxu0 %v146
  %188 = vmatprep.subr.bf16.mxu0 0
  %189 = vmatpush1.bf16.msra.mxu0 %v145
  %190 = vmatprep.subr.bf16.mxu0 0
  %191 = vmatpush1.bf16.msra.mxu0 %v144
  %192 = vmatprep.subr.bf16.mxu0 0
  %193 = vmatpush2.bf16.msra.mxu0 %v159
  %194 = vmatprep.subr.bf16.mxu0 0
  %195 = vmatpush2.bf16.msra.mxu0 %v158
  %196 = vmatprep.subr.bf16.mxu0 0
  %197 = vmatpush2.bf16.msra.mxu0 %v157
  %198 = vmatprep.subr.bf16.mxu0 0
  %199 = vmatpush2.bf16.msra.mxu0 %v156
  %200 = vmatprep.subr.bf16.mxu0 0
  %201 = vmatpush2.bf16.msra.mxu0 %v155
  %202 = vmatprep.subr.bf16.mxu0 0
  %203 = vmatpush2.bf16.msra.mxu0 %v154
  %204 = vmatprep.subr.bf16.mxu0 0
  %205 = vmatpush2.bf16.msra.mxu0 %v153
  %206 = vmatprep.subr.bf16.mxu0 0
  %207 = vmatpush2.bf16.msra.mxu0 %v152
  %208 = vmatprep.mubr.bf16.mxu0 %v77
  %209 = vmatmul.mubr.bf16.gmra.mxu0 %v70
  %v210 = vpop.f32.mrf.mxu0
  %v211 = vadd.f32 %v53, %v210
  %v212 = vpop.f32.mrf.mxu0
  %v213 = vpop.f32.mrf.mxu0
  %v214 = vpop.f32.mrf.mxu0
  %215 = vdwg.mxu0
  %216 = vst [vmem:[%s3] sm:$0x3] %v211
  // Predicated region
  $region14: #{dcgan_discriminator_forward.5} parent=0 // pred_check
    _
  $region15: #{dcgan_discriminator_forward.5} parent=0 // pred_check_branch
    %218 = sbr.rel (0) target = $region17
  $region16: #{dcgan_discriminator_forward.5} parent=0 // pred_region
    _
  $region17: #{dcgan_discriminator_forward.5} parent=0 // pred_fallthru
    _
  // Predicated region
  $region18: #{dcgan_discriminator_forward.5} parent=0 // pred_check
    _
  $region19: #{dcgan_discriminator_forward.5} parent=0 // pred_check_branch
    %220 = sbr.rel (0) target = $region21
  $region20: #{dcgan_discriminator_forward.5} parent=0 // pred_region
    _
  $region21: #{dcgan_discriminator_forward.5} parent=0 // pred_fallthru
    _

// kernel: dcgan_discriminator_forward.4
$region0: #{dcgan_discriminator_forward.4}
  #allocation0 [shape = 'u32[]', space=smem, size = 0x4, offset = 0x4, fixed_abs, tag = 'smem constant byte address 0x4 - core index']
  #allocation1 [shape = 'u32[144,128]{1,0:T(1,128)}', space=vmem, size = 0x12000, scoped, tag = 'internal scratch']
  %s0 = inlined_call_operand.vmem [shape: bf16[2,32,32], index: 0, kind: input, shape index: {}]
  %s1 = inlined_call_operand.vmem [shape: bf16[9,8,128], index: 1, kind: input, shape index: {}]
  %s2 = inlined_call_operand.vmem [shape: f32[1,128], index: 2, kind: input, shape index: {}]
  %s3 = inlined_call_operand.vmem [shape: bf16[2,20,128], index: 3, kind: output, shape index: {}]
  %s4 = sld [smem:[#allocation0]]
  $region45: #{dcgan_discriminator_forward.4} parent=0
    _
  %s6 = ssub.s32 1, %s4
  %s7 = scalar_select 0, %s6, %s4
  loop: start=0, step=1, limit=4
  $region2: #{dcgan_discriminator_forward.4} parent=0 // loop_pre_header
    _
  $region3: #{dcgan_discriminator_forward.4} parent=0 // loop_header
    %s9 = sphi 0, %s13
    %p10 = scmp.ge.s32.totalorder %s9, 4
    %s16 = sphi 0, %s28
    %s17 = sphi 0, %s24
    %s18 = sphi 0, %s16
    %s19 = sphi 0, %s17
    %s20 = sphi 0, %s18
    %s21 = sphi 0, %s19
    %s31 = sphi 0, %s33
    %s34 = sphi 0, %s31
    %s35 = sphi 0, %s34
    %s51 = sphi 0, %s35
    %s57 = sphi 0, %s59
    %s60 = sphi 0, %s57
    %s61 = sphi 0, %s60
    %s77 = sphi 0, %s61
    %s83 = sphi 0, %s85
    %s86 = sphi 0, %s83
    %s87 = sphi 0, %s86
    %s103 = sphi 0, %s87
    %s111 = sphi 0, %s113
    %s114 = sphi 0, %s111
    %s115 = sphi 0, %s114
    %s131 = sphi 0, %s115
  $region4: #{dcgan_discriminator_forward.4} parent=0 // loop_header_branch
    %12 = sbr.rel (%p10) target = $region8
  $region5: #{dcgan_discriminator_forward.4} parent=0 // loop_body
    %s14 = ssub.s32 %s9, 1
    %s15 = ssub.s32 %s9, 2
    %s22 = sadd.s32 1, %s17
    %p23 = scmp.ge.s32.totalorder %s22, 1
    %s24 = scalar_select %p23, 0, %s22
    %s25 = sadd.s32 1, %s16
    %s26 = scalar_select %p23, %s25, %s16
    %p27 = scmp.ge.s32.totalorder %s26, 2
    %s28 = scalar_select %p27, 0, %s26
    %s29 = ssub.s32 %s16, %s28
    %p30 = scmp.eq.s32.totalorder %s29, 0
    %s32 = sadd.s32 %s31, 1
    %s33 = scalar_select %p30, %s31, %s32
    %p36 = pneg %p30
    %p37 = scmp.eq.s32.totalorder %s9, 1
    %p38 = por %p36, %p37
    %p39 = scmp.ne.s32.totalorder %s31, %s34
    %p40 = scmp.eq.s32.totalorder %s9, 0
    %p41 = por %p39, %p40
    %p42 = scmp.ne.s32.totalorder %s31, %s34
    %p43 = scmp.eq.s32.totalorder %s14, 1
    %p44 = por %p42, %p43
    %p45 = scmp.ne.s32.totalorder %s34, %s35
    %p46 = scmp.eq.s32.totalorder %s14, 0
    %p47 = por %p45, %p46
    %p48 = scmp.ne.s32.totalorder %s34, %s35
    %p49 = scmp.eq.s32.totalorder %s15, 1
    %p50 = por %p48, %p49
    %p52 = scmp.ne.s32.totalorder %s35, %s51
    %p53 = scmp.eq.s32.totalorder %s15, 0
    %p54 = por %p52, %p53
    %s55 = ssub.s32 %s17, %s24
    %p56 = scmp.eq.s32.totalorder %s55, 0
    %s58 = sadd.s32 %s57, 1
    %s59 = scalar_select %p56, %s57, %s58
    %p62 = pneg %p56
    %p63 = scmp.eq.s32.totalorder %s9, 1
    %p64 = por %p62, %p63
    %p65 = scmp.ne.s32.totalorder %s57, %s60
    %p66 = scmp.eq.s32.totalorder %s9, 0
    %p67 = por %p65, %p66
    %p68 = scmp.ne.s32.totalorder %s57, %s60
    %p69 = scmp.eq.s32.totalorder %s14, 1
    %p70 = por %p68, %p69
    %p71 = scmp.ne.s32.totalorder %s60, %s61
    %p72 = scmp.eq.s32.totalorder %s14, 0
    %p73 = por %p71, %p72
    %p74 = scmp.ne.s32.totalorder %s60, %s61
    %p75 = scmp.eq.s32.totalorder %s15, 1
    %p76 = por %p74, %p75
    %p78 = scmp.ne.s32.totalorder %s61, %s77
    %p79 = scmp.eq.s32.totalorder %s15, 0
    %p80 = por %p78, %p79
    %s81 = ssub.s32 %s17, %s24
    %p82 = scmp.eq.s32.totalorder %s81, 0
    %s84 = sadd.s32 %s83, 1
    %s85 = scalar_select %p82, %s83, %s84
    %p88 = pneg %p82
    %p89 = scmp.eq.s32.totalorder %s9, 1
    %p90 = por %p88, %p89
    %p91 = scmp.ne.s32.totalorder %s83, %s86
    %p92 = scmp.eq.s32.totalorder %s9, 0
    %p93 = por %p91, %p92
    %p94 = scmp.ne.s32.totalorder %s83, %s86
    %p95 = scmp.eq.s32.totalorder %s14, 1
    %p96 = por %p94, %p95
    %p97 = scmp.ne.s32.totalorder %s86, %s87
    %p98 = scmp.eq.s32.totalorder %s14, 0
    %p99 = por %p97, %p98
    %p100 = scmp.ne.s32.totalorder %s86, %s87
    %p101 = scmp.eq.s32.totalorder %s15, 1
    %p102 = por %p100, %p101
    %p104 = scmp.ne.s32.totalorder %s87, %s103
    %p105 = scmp.eq.s32.totalorder %s15, 0
    %p106 = por %p104, %p105
    %s107 = ssub.s32 %s16, %s28
    %s108 = ssub.s32 %s17, %s24
    %s109 = sor.u32 %s107, %s108
    %p110 = scmp.eq.s32.totalorder %s109, 0
    %s112 = sadd.s32 %s111, 1
    %s113 = scalar_select %p110, %s111, %s112
    %p116 = pneg %p110
    %p117 = scmp.eq.s32.totalorder %s9, 1
    %p118 = por %p116, %p117
    %p119 = scmp.ne.s32.totalorder %s111, %s114
    %p120 = scmp.eq.s32.totalorder %s9, 0
    %p121 = por %p119, %p120
    %p122 = scmp.ne.s32.totalorder %s111, %s114
    %p123 = scmp.eq.s32.totalorder %s14, 1
    %p124 = por %p122, %p123
    %p125 = scmp.ne.s32.totalorder %s114, %s115
    %p126 = scmp.eq.s32.totalorder %s14, 0
    %p127 = por %p125, %p126
    %p128 = scmp.ne.s32.totalorder %s114, %s115
    %p129 = scmp.eq.s32.totalorder %s15, 1
    %p130 = por %p128, %p129
    %p132 = scmp.ne.s32.totalorder %s115, %s131
    %p133 = scmp.eq.s32.totalorder %s15, 0
    %p134 = por %p132, %p133
    %p135 = scmp.le.s32.totalorder 1, %s9
    %p136 = scmp.lt.s32.totalorder %s9, 3
    %p137 = pnand %p135, %p136
    %p138 = pneg %p137
    // Predicated region
    $region9: #{dcgan_discriminator_forward.4} parent=5 // pred_check
      _
    $region10: #{dcgan_discriminator_forward.4} parent=5 // pred_check_branch
      %140 = sbr.rel (%p137) target = $region12
    $region11: #{dcgan_discriminator_forward.4} parent=5 // pred_region
      %s141 = ssub.s32 %s9, 1
      // Predicated region
      $region13: #{dcgan_discriminator_forward.4} parent=11 // pred_check
        %p142 = pneg %p73
      $region14: #{dcgan_discriminator_forward.4} parent=11 // pred_check_branch
        %144 = sbr.rel (%p142) target = $region16
      $region15: #{dcgan_discriminator_forward.4} parent=11 // pred_region
        %p145 = scmp.lt.s32.totalorder %s19, 0
        %s146 = scalar_select %p145, %s19, 0
        %s147 = smul.addr %s146, 4
        %s148 = scalar_lea.vmem %s1, %s147
      $region16: #{dcgan_discriminator_forward.4} parent=11 // pred_fallthru
        _
      // Predicated region
      $region17: #{dcgan_discriminator_forward.4} parent=11 // pred_check
        %p149 = pneg %p99
      $region18: #{dcgan_discriminator_forward.4} parent=11 // pred_check_branch
        %151 = sbr.rel (%p149) target = $region20
      $region19: #{dcgan_discriminator_forward.4} parent=11 // pred_region
        %p152 = scmp.lt.s32.totalorder %s19, 0
        %s153 = scalar_select %p152, %s19, 0
        %s154 = scalar_lea.vmem %s2, %s153
      $region20: #{dcgan_discriminator_forward.4} parent=11 // pred_fallthru
        _
    $region12: #{dcgan_discriminator_forward.4} parent=5 // pred_fallthru
      _
    %p155 = scmp.lt.s32.totalorder %s9, 2
    // Predicated region
    $region21: #{dcgan_discriminator_forward.4} parent=5 // pred_check
      %p156 = pneg %p155
    $region22: #{dcgan_discriminator_forward.4} parent=5 // pred_check_branch
      %158 = sbr.rel (%p156) target = $region24
    $region23: #{dcgan_discriminator_forward.4} parent=5 // pred_region
      // Predicated region
      $region25: #{dcgan_discriminator_forward.4} parent=23 // pred_check
        %p159 = pneg %p41
      $region26: #{dcgan_discriminator_forward.4} parent=23 // pred_check_branch
        %161 = sbr.rel (%p159) target = $region28
      $region27: #{dcgan_discriminator_forward.4} parent=23 // pred_region
        %p162 = scmp.lt.s32.totalorder %s16, 1
        %s163 = scalar_select %p162, %s16, 1
        %s164 = smul.addr %s163, 4
        %s165 = smul.addr %s164, 4
        %s166 = scalar_lea.vmem %s0, %s165
      $region28: #{dcgan_discriminator_forward.4} parent=23 // pred_fallthru
        _
    $region24: #{dcgan_discriminator_forward.4} parent=5 // pred_fallthru
      _
    %p167 = scmp.le.s32.totalorder 1, %s9
    %p168 = scmp.lt.s32.totalorder %s9, 3
    %p169 = pnand %p167, %p168
    %p170 = pneg %p169
    // Predicated region
    $region29: #{dcgan_discriminator_forward.4} parent=5 // pred_check
      _
    $region30: #{dcgan_discriminator_forward.4} parent=5 // pred_check_branch
      %172 = sbr.rel (%p169) target = $region32
    $region31: #{dcgan_discriminator_forward.4} parent=5 // pred_region
      %s173 = ssub.s32 %s9, 1
      %p174 = scmp.lt.s32.totalorder %s18, 1
      %s175 = scalar_select %p174, %s18, 1
      %s176 = smul.addr %s175, 4
      %s177 = smul.addr %s176, 4
      %s178 = scalar_lea.vmem %s0, %s177
      %p179 = pneg %p47
      %p180 = pneg %p44
      %p181 = scmp.lt.s32.totalorder %s19, 0
      %s182 = scalar_select %p181, %s19, 0
      %s183 = smul.addr %s182, 4
      %s184 = scalar_lea.vmem %s1, %s183
      %p185 = pneg %p73
      %p186 = pneg %p70
      %p187 = scmp.lt.s32.totalorder %s19, 0
      %s188 = scalar_select %p187, %s19, 0
      %s189 = scalar_lea.vmem %s2, %s188
      %p190 = pneg %p99
      %p191 = pneg %p96
      %p192 = pneg %p127
      %p193 = pneg %p124
      %p194 = scmp.lt.s32.totalorder %s18, 1
      %s195 = scalar_select %p194, %s18, 1
      %p196 = scmp.lt.s32.totalorder %s19, 0
      %s197 = scalar_select %p196, %s19, 0
      %s198 = smul.addr %s195, 3
      %s199 = sadd.s32 %s197, %s198
      %s200 = smul.addr %s199, 4
      %s201 = scalar_lea.vmem %s3, %s200
      %p202 = scmp.lt.s32.totalorder %s18, 1
      %s203 = scalar_select %p202, %s18, 1
      %s204 = smul.addr %s203, 4
      %s205 = smul.addr %s204, 4
      %s206 = scalar_lea.vmem %s0, %s205
      %p207 = scmp.lt.s32.totalorder %s19, 0
      %s208 = scalar_select %p207, %s19, 0
      %s209 = smul.addr %s208, 4
      %s210 = scalar_lea.vmem %s1, %s209
      %p211 = scmp.lt.s32.totalorder %s19, 0
      %s212 = scalar_select %p211, %s19, 0
      %s213 = scalar_lea.vmem %s2, %s212
      %p214 = scmp.lt.s32.totalorder %s18, 1
      %s215 = scalar_select %p214, %s18, 1
      %p216 = scmp.lt.s32.totalorder %s19, 0
      %s217 = scalar_select %p216, %s19, 0
      %s218 = smul.addr %s215, 3
      %s219 = sadd.s32 %s217, %s218
      %s220 = smul.addr %s219, 4
      %s221 = scalar_lea.vmem %s3, %s220
      %v223 = vld [vmem:[%s206] sm:$0xf]
      %v224 = vld [vmem:[%s206 + $0x4] sm:$0xf]
      %v225 = vld [vmem:[%s206 + $0x8] sm:$0x3]
      %v226 = vld [vmem:[%s210] sm:$0xf]
      %s227 = scalar_lea.vmem %s210, 4
      %v228 = vld [vmem:[%s227] sm:$0xf]
      %v232 = vunpack.c.l.b16 %v223
      %v233 = vunpack.c.l.b16 %v224
      %v234 = vunpack.c.l.b16 %v225
      %v235 = vpack.c.b16 %v233, %v232
      %v236 = vpack.c.b16 %v234, %v234
      %237 = vrot.lane.b32.xlu0 %v235, 120
      %v238 = vpop.permute.xlu0 %237
      %239 = vrot.lane.b32.xlu0 %v236, 120
      %v240 = vpop.permute.xlu0 %239
      %vm241 = vcmask 64512
      %v243 = vsel %vm241, %v238, 0
      %v246 = vsel %vm241, %v240, 0
      %vm248 = vcmask 1043456
      %v250 = vsel %vm248, %v228, 0
      %252 = vmatprep.subr.bf16.mxu0 0
      %253 = vmatpush1.bf16.msra.mxu0 0
      %254 = vmatprep.subr.bf16.mxu0 0
      %255 = vmatpush1.bf16.msra.mxu0 0
      %256 = vmatprep.subr.bf16.mxu0 0
      %257 = vmatpush1.bf16.msra.mxu0 0
      %258 = vmatprep.subr.bf16.mxu0 0
      %259 = vmatpush1.bf16.msra.mxu0 0
      %260 = vmatprep.subr.bf16.mxu0 0
      %261 = vmatpush1.bf16.msra.mxu0 0
      %262 = vmatprep.subr.bf16.mxu0 0
      %263 = vmatpush1.bf16.msra.mxu0 0
      %264 = vmatprep.subr.bf16.mxu0 0
      %265 = vmatpush1.bf16.msra.mxu0 0
      %266 = vmatprep.subr.bf16.mxu0 0
      %267 = vmatpush1.bf16.msra.mxu0 %v250
      %268 = vmatprep.subr.bf16.mxu0 0
      %269 = vmatpush2.bf16.msra.mxu0 0
      %270 = vmatprep.subr.bf16.mxu0 0
      %271 = vmatpush2.bf16.msra.mxu0 0
      %272 = vmatprep.subr.bf16.mxu0 0
      %273 = vmatpush2.bf16.msra.mxu0 0
      %274 = vmatprep.subr.bf16.mxu0 0
      %275 = vmatpush2.bf16.msra.mxu0 0
      %276 = vmatprep.subr.bf16.mxu0 0
      %277 = vmatpush2.bf16.msra.mxu0 0
      %278 = vmatprep.subr.bf16.mxu0 0
      %279 = vmatpush2.bf16.msra.mxu0 0
      %280 = vmatprep.subr.bf16.mxu0 0
      %281 = vmatpush2.bf16.msra.mxu0 0
      %282 = vmatprep.subr.bf16.mxu0 0
      %283 = vmatpush2.bf16.msra.mxu0 0
      %284 = vmatprep.mubr.bf16.mxu0 0
      %285 = vmatmul.mubr.bf16.gmra.mxu0 %v243
      %v286 = vpop.f32.mrf.mxu0
      %v287 = vadd.f32 0.0, %v286
      %v288 = vpop.f32.mrf.mxu0
      %v289 = vpop.f32.mrf.mxu0
      %v290 = vadd.f32 0.0, %v289
      %v291 = vpop.f32.mrf.mxu0
      %292 = vmatprep.mubr.bf16.mxu0 0
      %293 = vmatmul.mubr.bf16.gmra.mxu0 %v246
      %v294 = vpop.f32.mrf.mxu0
      %v295 = vadd.f32 0.0, %v294
      %v296 = vpop.f32.mrf.mxu0
      %v297 = vpop.f32.mrf.mxu0
      %v298 = vpop.f32.mrf.mxu0
      %299 = vdwg.mxu0
      %v301 = vsel %vm241, %v235, 0
      %v304 = vsel %vm241, %v236, 0
      %v307 = vsel %vm248, %v226, 0
      %309 = vmatprep.subr.bf16.mxu0 0
      %310 = vmatpush1.bf16.msra.mxu0 0
      %311 = vmatprep.subr.bf16.mxu0 0
      %312 = vmatpush1.bf16.msra.mxu0 0
      %313 = vmatprep.subr.bf16.mxu0 0
      %314 = vmatpush1.bf16.msra.mxu0 0
      %315 = vmatprep.subr.bf16.mxu0 0
      %316 = vmatpush1.bf16.msra.mxu0 0
      %317 = vmatprep.subr.bf16.mxu0 0
      %318 = vmatpush1.bf16.msra.mxu0 0
      %319 = vmatprep.subr.bf16.mxu0 0
      %320 = vmatpush1.bf16.msra.mxu0 0
      %321 = vmatprep.subr.bf16.mxu0 0
      %322 = vmatpush1.bf16.msra.mxu0 0
      %323 = vmatprep.subr.bf16.mxu0 0
      %324 = vmatpush1.bf16.msra.mxu0 %v307
      %325 = vmatprep.subr.bf16.mxu0 0
      %326 = vmatpush2.bf16.msra.mxu0 0
      %327 = vmatprep.subr.bf16.mxu0 0
      %328 = vmatpush2.bf16.msra.mxu0 0
      %329 = vmatprep.subr.bf16.mxu0 0
      %330 = vmatpush2.bf16.msra.mxu0 0
      %331 = vmatprep.subr.bf16.mxu0 0
      %332 = vmatpush2.bf16.msra.mxu0 0
      %333 = vmatprep.subr.bf16.mxu0 0
      %334 = vmatpush2.bf16.msra.mxu0 0
      %335 = vmatprep.subr.bf16.mxu0 0
      %336 = vmatpush2.bf16.msra.mxu0 0
      %337 = vmatprep.subr.bf16.mxu0 0
      %338 = vmatpush2.bf16.msra.mxu0 0
      %339 = vmatprep.subr.bf16.mxu0 0
      %340 = vmatpush2.bf16.msra.mxu0 0
      %341 = vmatprep.mubr.bf16.mxu0 0
      %342 = vmatmul.mubr.bf16.gmra.mxu0 %v301
      %v343 = vpop.f32.mrf.mxu0
      %v344 = vadd.f32 %v287, %v343
      %v345 = vpop.f32.mrf.mxu0
      %v346 = vpop.f32.mrf.mxu0
      %v347 = vadd.f32 %v290, %v346
      %v348 = vpop.f32.mrf.mxu0
      %349 = vmatprep.mubr.bf16.mxu0 0
      %350 = vmatmul.mubr.bf16.gmra.mxu0 %v304
      %v351 = vpop.f32.mrf.mxu0
      %v352 = vadd.f32 %v295, %v351
      %v353 = vpop.f32.mrf.mxu0
      %v354 = vpop.f32.mrf.mxu0
      %v355 = vpop.f32.mrf.mxu0
      %356 = vdwg.mxu0
      %v357 = vld [vmem:[%s206 + $0x8] sm:$0x7]
      %s358 = scalar_lea.vmem %s210, 8
      %v359 = vld [vmem:[%s358] sm:$0xf]
      %v361 = vunpack.c.l.b16 %v357
      %v362 = vpack.c.b16 %v361, %v361
      %vm363 = vsmask.f32 7424
      %v364 = vshrl.u32 %v235, 16
      %v366 = vshll.u32 %v235, 16
      %v368 = vrot.slane %v366, 1
      %v369 = vor.u32 %v364, %v368
      %v371 = vshll.u32 %v362, 16
      %v373 = vrot.slane %v371, 1
      %v374 = vsel %vm363, %v369, %v373
      %v375 = vshrl.u32 %v362, 16
      %v377 = vor.u32 %v375, %v373
      %v379 = vsel %vm241, %v374, 0
      %v382 = vsel %vm241, %v377, 0
      %v385 = vsel %vm248, %v359, 0
      %387 = vmatprep.subr.bf16.mxu0 0
      %388 = vmatpush1.bf16.msra.mxu0 0
      %389 = vmatprep.subr.bf16.mxu0 0
      %390 = vmatpush1.bf16.msra.mxu0 0
      %391 = vmatprep.subr.bf16.mxu0 0
      %392 = vmatpush1.bf16.msra.mxu0 0
      %393 = vmatprep.subr.bf16.mxu0 0
      %394 = vmatpush1.bf16.msra.mxu0 0
      %395 = vmatprep.subr.bf16.mxu0 0
      %396 = vmatpush1.bf16.msra.mxu0 0
      %397 = vmatprep.subr.bf16.mxu0 0
      %398 = vmatpush1.bf16.msra.mxu0 0
      %399 = vmatprep.subr.bf16.mxu0 0
      %400 = vmatpush1.bf16.msra.mxu0 0
      %401 = vmatprep.subr.bf16.mxu0 0
      %402 = vmatpush1.bf16.msra.mxu0 %v385
      %403 = vmatprep.subr.bf16.mxu0 0
      %404 = vmatpush2.bf16.msra.mxu0 0
      %405 = vmatprep.subr.bf16.mxu0 0
      %406 = vmatpush2.bf16.msra.mxu0 0
      %407 = vmatprep.subr.bf16.mxu0 0
      %408 = vmatpush2.bf16.msra.mxu0 0
      %409 = vmatprep.subr.bf16.mxu0 0
      %410 = vmatpush2.bf16.msra.mxu0 0
      %411 = vmatprep.subr.bf16.mxu0 0
      %412 = vmatpush2.bf16.msra.mxu0 0
      %413 = vmatprep.subr.bf16.mxu0 0
      %414 = vmatpush2.bf16.msra.mxu0 0
      %415 = vmatprep.subr.bf16.mxu0 0
      %416 = vmatpush2.bf16.msra.mxu0 0
      %417 = vmatprep.subr.bf16.mxu0 0
      %418 = vmatpush2.bf16.msra.mxu0 0
      %419 = vmatprep.mubr.bf16.mxu0 0
      %420 = vmatmul.mubr.bf16.gmra.mxu0 %v379
      %v421 = vpop.f32.mrf.mxu0
      %v422 = vadd.f32 0.0, %v421
      %v423 = vpop.f32.mrf.mxu0
      %v424 = vpop.f32.mrf.mxu0
      %v425 = vadd.f32 0.0, %v424
      %v426 = vpop.f32.mrf.mxu0
      %427 = vmatprep.mubr.bf16.mxu0 0
      %428 = vmatmul.mubr.bf16.gmra.mxu0 %v382
      %v429 = vpop.f32.mrf.mxu0
      %v430 = vadd.f32 0.0, %v429
      %v431 = vpop.f32.mrf.mxu0
      %v432 = vpop.f32.mrf.mxu0
      %v433 = vpop.f32.mrf.mxu0
      %434 = vdwg.mxu0
      %v435 = vadd.f32 %v344, %v422
      %v436 = vadd.f32 %v347, %v425
      %v437 = vadd.f32 %v352, %v430
      %s438 = scalar_lea.vmem %s210, 12
      %v439 = vld [vmem:[%s438] sm:$0xf]
      %440 = vrot.lane.b32.xlu0 %v235, 112
      %v441 = vpop.permute.xlu0 %440
      %442 = vrot.lane.b32.xlu0 %v236, 112
      %v443 = vpop.permute.xlu0 %442
      %v445 = vsel %vm241, %v441, 0
      %v448 = vsel %vm241, %v443, 0
      %v451 = vsel %vm248, %v439, 0
      %453 = vmatprep.subr.bf16.mxu0 0
      %454 = vmatpush1.bf16.msra.mxu0 0
      %455 = vmatprep.subr.bf16.mxu0 0
      %456 = vmatpush1.bf16.msra.mxu0 0
      %457 = vmatprep.subr.bf16.mxu0 0
      %458 = vmatpush1.bf16.msra.mxu0 0
      %459 = vmatprep.subr.bf16.mxu0 0
      %460 = vmatpush1.bf16.msra.mxu0 0
      %461 = vmatprep.subr.bf16.mxu0 0
      %462 = vmatpush1.bf16.msra.mxu0 0
      %463 = vmatprep.subr.bf16.mxu0 0
      %464 = vmatpush1.bf16.msra.mxu0 0
      %465 = vmatprep.subr.bf16.mxu0 0
      %466 = vmatpush1.bf16.msra.mxu0 0
      %467 = vmatprep.subr.bf16.mxu0 0
      %468 = vmatpush1.bf16.msra.mxu0 %v451
      %469 = vmatprep.subr.bf16.mxu0 0
      %470 = vmatpush2.bf16.msra.mxu0 0
      %471 = vmatprep.subr.bf16.mxu0 0
      %472 = vmatpush2.bf16.msra.mxu0 0
      %473 = vmatprep.subr.bf16.mxu0 0
      %474 = vmatpush2.bf16.msra.mxu0 0
      %475 = vmatprep.subr.bf16.mxu0 0
      %476 = vmatpush2.bf16.msra.mxu0 0
      %477 = vmatprep.subr.bf16.mxu0 0
      %478 = vmatpush2.bf16.msra.mxu0 0
      %479 = vmatprep.subr.bf16.mxu0 0
      %480 = vmatpush2.bf16.msra.mxu0 0
      %481 = vmatprep.subr.bf16.mxu0 0
      %482 = vmatpush2.bf16.msra.mxu0 0
      %483 = vmatprep.subr.bf16.mxu0 0
      %484 = vmatpush2.bf16.msra.mxu0 0
      %485 = vmatprep.mubr.bf16.mxu0 0
      %486 = vmatmul.mubr.bf16.gmra.mxu0 %v445
      %v487 = vpop.f32.mrf.mxu0
      %v488 = vadd.f32 0.0, %v487
      %v489 = vpop.f32.mrf.mxu0
      %v490 = vpop.f32.mrf.mxu0
      %v491 = vadd.f32 0.0, %v490
      %v492 = vpop.f32.mrf.mxu0
      %493 = vmatprep.mubr.bf16.mxu0 0
      %494 = vmatmul.mubr.bf16.gmra.mxu0 %v448
      %v495 = vpop.f32.mrf.mxu0
      %v496 = vadd.f32 0.0, %v495
      %v497 = vpop.f32.mrf.mxu0
      %v498 = vpop.f32.mrf.mxu0
      %v499 = vpop.f32.mrf.mxu0
      %500 = vdwg.mxu0
      %v501 = vadd.f32 %v435, %v488
      %v502 = vadd.f32 %v436, %v491
      %v503 = vadd.f32 %v437, %v496
      %s504 = scalar_lea.vmem %s210, 16
      %v505 = vld [vmem:[%s504] sm:$0xf]
      %506 = vrot.lane.b32.xlu0 %v235, 104
      %v507 = vpop.permute.xlu0 %506
      %508 = vrot.lane.b32.xlu0 %v236, 104
      %v509 = vpop.permute.xlu0 %508
      %v511 = vsel %vm241, %v507, 0
      %v514 = vsel %vm241, %v509, 0
      %v517 = vsel %vm248, %v505, 0
      %519 = vmatprep.subr.bf16.mxu0 0
      %520 = vmatpush1.bf16.msra.mxu0 0
      %521 = vmatprep.subr.bf16.mxu0 0
      %522 = vmatpush1.bf16.msra.mxu0 0
      %523 = vmatprep.subr.bf16.mxu0 0
      %524 = vmatpush1.bf16.msra.mxu0 0
      %525 = vmatprep.subr.bf16.mxu0 0
      %526 = vmatpush1.bf16.msra.mxu0 0
      %527 = vmatprep.subr.bf16.mxu0 0
      %528 = vmatpush1.bf16.msra.mxu0 0
      %529 = vmatprep.subr.bf16.mxu0 0
      %530 = vmatpush1.bf16.msra.mxu0 0
      %531 = vmatprep.subr.bf16.mxu0 0
      %532 = vmatpush1.bf16.msra.mxu0 0
      %533 = vmatprep.subr.bf16.mxu0 0
      %534 = vmatpush1.bf16.msra.mxu0 %v517
      %535 = vmatprep.subr.bf16.mxu0 0
      %536 = vmatpush2.bf16.msra.mxu0 0
      %537 = vmatprep.subr.bf16.mxu0 0
      %538 = vmatpush2.bf16.msra.mxu0 0
      %539 = vmatprep.subr.bf16.mxu0 0
      %540 = vmatpush2.bf16.msra.mxu0 0
      %541 = vmatprep.subr.bf16.mxu0 0
      %542 = vmatpush2.bf16.msra.mxu0 0
      %543 = vmatprep.subr.bf16.mxu0 0
      %544 = vmatpush2.bf16.msra.mxu0 0
      %545 = vmatprep.subr.bf16.mxu0 0
      %546 = vmatpush2.bf16.msra.mxu0 0
      %547 = vmatprep.subr.bf16.mxu0 0
      %548 = vmatpush2.bf16.msra.mxu0 0
      %549 = vmatprep.subr.bf16.mxu0 0
      %550 = vmatpush2.bf16.msra.mxu0 0
      %551 = vmatprep.mubr.bf16.mxu0 0
      %552 = vmatmul.mubr.bf16.gmra.mxu0 %v511
      %v553 = vpop.f32.mrf.mxu0
      %v554 = vadd.f32 0.0, %v553
      %v555 = vpop.f32.mrf.mxu0
      %v556 = vpop.f32.mrf.mxu0
      %v557 = vadd.f32 0.0, %v556
      %v558 = vpop.f32.mrf.mxu0
      %559 = vmatprep.mubr.bf16.mxu0 0
      %560 = vmatmul.mubr.bf16.gmra.mxu0 %v514
      %v561 = vpop.f32.mrf.mxu0
      %v562 = vadd.f32 0.0, %v561
      %v563 = vpop.f32.mrf.mxu0
      %v564 = vpop.f32.mrf.mxu0
      %v565 = vpop.f32.mrf.mxu0
      %566 = vdwg.mxu0
      %v567 = vadd.f32 %v501, %v554
      %v568 = vadd.f32 %v502, %v557
      %v569 = vadd.f32 %v503, %v562
      %s570 = scalar_lea.vmem %s210, 20
      %v571 = vld [vmem:[%s570] sm:$0xf]
      %572 = vrot.lane.b32.xlu0 %v374, 112
      %v573 = vpop.permute.xlu0 %572
      %574 = vrot.lane.b32.xlu0 %v377, 112
      %v575 = vpop.permute.xlu0 %574
      %v577 = vsel %vm241, %v573, 0
      %v580 = vsel %vm241, %v575, 0
      %v583 = vsel %vm248, %v571, 0
      %585 = vmatprep.subr.bf16.mxu0 0
      %586 = vmatpush1.bf16.msra.mxu0 0
      %587 = vmatprep.subr.bf16.mxu0 0
      %588 = vmatpush1.bf16.msra.mxu0 0
      %589 = vmatprep.subr.bf16.mxu0 0
      %590 = vmatpush1.bf16.msra.mxu0 0
      %591 = vmatprep.subr.bf16.mxu0 0
      %592 = vmatpush1.bf16.msra.mxu0 0
      %593 = vmatprep.subr.bf16.mxu0 0
      %594 = vmatpush1.bf16.msra.mxu0 0
      %595 = vmatprep.subr.bf16.mxu0 0
      %596 = vmatpush1.bf16.msra.mxu0 0
      %597 = vmatprep.subr.bf16.mxu0 0
      %598 = vmatpush1.bf16.msra.mxu0 0
      %599 = vmatprep.subr.bf16.mxu0 0
      %600 = vmatpush1.bf16.msra.mxu0 %v583
      %601 = vmatprep.subr.bf16.mxu0 0
      %602 = vmatpush2.bf16.msra.mxu0 0
      %603 = vmatprep.subr.bf16.mxu0 0
      %604 = vmatpush2.bf16.msra.mxu0 0
      %605 = vmatprep.subr.bf16.mxu0 0
      %606 = vmatpush2.bf16.msra.mxu0 0
      %607 = vmatprep.subr.bf16.mxu0 0
      %608 = vmatpush2.bf16.msra.mxu0 0
      %609 = vmatprep.subr.bf16.mxu0 0
      %610 = vmatpush2.bf16.msra.mxu0 0
      %611 = vmatprep.subr.bf16.mxu0 0
      %612 = vmatpush2.bf16.msra.mxu0 0
      %613 = vmatprep.subr.bf16.mxu0 0
      %614 = vmatpush2.bf16.msra.mxu0 0
      %615 = vmatprep.subr.bf16.mxu0 0
      %616 = vmatpush2.bf16.msra.mxu0 0
      %617 = vmatprep.mubr.bf16.mxu0 0
      %618 = vmatmul.mubr.bf16.gmra.mxu0 %v577
      %v619 = vpop.f32.mrf.mxu0
      %v620 = vadd.f32 0.0, %v619
      %v621 = vpop.f32.mrf.mxu0
      %v622 = vpop.f32.mrf.mxu0
      %v623 = vadd.f32 0.0, %v622
      %v624 = vpop.f32.mrf.mxu0
      %625 = vmatprep.mubr.bf16.mxu0 0
      %626 = vmatmul.mubr.bf16.gmra.mxu0 %v580
      %v627 = vpop.f32.mrf.mxu0
      %v628 = vadd.f32 0.0, %v627
      %v629 = vpop.f32.mrf.mxu0
      %v630 = vpop.f32.mrf.mxu0
      %v631 = vpop.f32.mrf.mxu0
      %632 = vdwg.mxu0
      %v633 = vadd.f32 %v567, %v620
      %v634 = vadd.f32 %v568, %v623
      %v635 = vadd.f32 %v569, %v628
      %v636 = vld [vmem:[%s206] sm:$0xc]
      %v637 = vld [vmem:[%s206 + $0x4] sm:$0xf]
      %v638 = vld [vmem:[%s206 + $0x8] sm:$0xf]
      %v639 = vld [vmem:[%s206 + $0xc] sm:$0x1]
      %s640 = scalar_lea.vmem %s210, 24
      %v641 = vld [vmem:[%s640] sm:$0xf]
      %v646 = vunpack.c.l.b16 %v636
      %v647 = vunpack.c.l.b16 %v637
      %v648 = vunpack.c.l.b16 %v638
      %v649 = vunpack.c.l.b16 %v639
      %v650 = vpack.c.b16 %v647, %v646
      %v651 = vpack.c.b16 %v649, %v648
      %vm652 = vsmask.f32 5376
      %v654 = vshrl.u32 %v650, 16
      %v656 = vrot.slane %v654, 2
      %v657 = vshll.u32 %v650, 16
      %v659 = vrot.slane %v657, 3
      %v660 = vor.u32 %v656, %v659
      %v662 = vshrl.u32 %v651, 16
      %v664 = vrot.slane %v662, 2
      %v665 = vshll.u32 %v651, 16
      %v667 = vrot.slane %v665, 3
      %v668 = vor.u32 %v664, %v667
      %v669 = vsel %vm652, %v660, %v668
      %v671 = vsel %vm241, %v669, 0
      %v674 = vsel %vm241, %v668, 0
      %v677 = vsel %vm248, %v641, 0
      %679 = vmatprep.subr.bf16.mxu0 0
      %680 = vmatpush1.bf16.msra.mxu0 0
      %681 = vmatprep.subr.bf16.mxu0 0
      %682 = vmatpush1.bf16.msra.mxu0 0
      %683 = vmatprep.subr.bf16.mxu0 0
      %684 = vmatpush1.bf16.msra.mxu0 0
      %685 = vmatprep.subr.bf16.mxu0 0
      %686 = vmatpush1.bf16.msra.mxu0 0
      %687 = vmatprep.subr.bf16.mxu0 0
      %688 = vmatpush1.bf16.msra.mxu0 0
      %689 = vmatprep.subr.bf16.mxu0 0
      %690 = vmatpush1.bf16.msra.mxu0 0
      %691 = vmatprep.subr.bf16.mxu0 0
      %692 = vmatpush1.bf16.msra.mxu0 0
      %693 = vmatprep.subr.bf16.mxu0 0
      %694 = vmatpush1.bf16.msra.mxu0 %v677
      %695 = vmatprep.subr.bf16.mxu0 0
      %696 = vmatpush2.bf16.msra.mxu0 0
      %697 = vmatprep.subr.bf16.mxu0 0
      %698 = vmatpush2.bf16.msra.mxu0 0
      %699 = vmatprep.subr.bf16.mxu0 0
      %700 = vmatpush2.bf16.msra.mxu0 0
      %701 = vmatprep.subr.bf16.mxu0 0
      %702 = vmatpush2.bf16.msra.mxu0 0
      %703 = vmatprep.subr.bf16.mxu0 0
      %704 = vmatpush2.bf16.msra.mxu0 0
      %705 = vmatprep.subr.bf16.mxu0 0
      %706 = vmatpush2.bf16.msra.mxu0 0
      %707 = vmatprep.subr.bf16.mxu0 0
      %708 = vmatpush2.bf16.msra.mxu0 0
      %709 = vmatprep.subr.bf16.mxu0 0
      %710 = vmatpush2.bf16.msra.mxu0 0
      %711 = vmatprep.mubr.bf16.mxu0 0
      %712 = vmatmul.mubr.bf16.gmra.mxu0 %v671
      %v713 = vpop.f32.mrf.mxu0
      %v714 = vadd.f32 0.0, %v713
      %v715 = vpop.f32.mrf.mxu0
      %v716 = vpop.f32.mrf.mxu0
      %v717 = vadd.f32 0.0, %v716
      %v718 = vpop.f32.mrf.mxu0
      %719 = vmatprep.mubr.bf16.mxu0 0
      %720 = vmatmul.mubr.bf16.gmra.mxu0 %v674
      %v721 = vpop.f32.mrf.mxu0
      %v722 = vadd.f32 0.0, %v721
      %v723 = vpop.f32.mrf.mxu0
      %v724 = vpop.f32.mrf.mxu0
      %v725 = vpop.f32.mrf.mxu0
      %726 = vdwg.mxu0
      %v727 = vadd.f32 %v633, %v714
      %v728 = vadd.f32 %v634, %v717
      %v729 = vadd.f32 %v635, %v722
      %s730 = scalar_lea.vmem %s210, 28
      %v731 = vld [vmem:[%s730] sm:$0xf]
      %732 = vrot.lane.b32.xlu0 %v669, 120
      %v733 = vpop.permute.xlu0 %732
      %734 = vrot.lane.b32.xlu0 %v668, 120
      %v735 = vpop.permute.xlu0 %734
      %v737 = vsel %vm241, %v733, 0
      %v740 = vsel %vm241, %v735, 0
      %v743 = vsel %vm248, %v731, 0
      %745 = vmatprep.subr.bf16.mxu0 0
      %746 = vmatpush1.bf16.msra.mxu0 0
      %747 = vmatprep.subr.bf16.mxu0 0
      %748 = vmatpush1.bf16.msra.mxu0 0
      %749 = vmatprep.subr.bf16.mxu0 0
      %750 = vmatpush1.bf16.msra.mxu0 0
      %751 = vmatprep.subr.bf16.mxu0 0
      %752 = vmatpush1.bf16.msra.mxu0 0
      %753 = vmatprep.subr.bf16.mxu0 0
      %754 = vmatpush1.bf16.msra.mxu0 0
      %755 = vmatprep.subr.bf16.mxu0 0
      %756 = vmatpush1.bf16.msra.mxu0 0
      %757 = vmatprep.subr.bf16.mxu0 0
      %758 = vmatpush1.bf16.msra.mxu0 0
      %759 = vmatprep.subr.bf16.mxu0 0
      %760 = vmatpush1.bf16.msra.mxu0 %v743
      %761 = vmatprep.subr.bf16.mxu0 0
      %762 = vmatpush2.bf16.msra.mxu0 0
      %763 = vmatprep.subr.bf16.mxu0 0
      %764 = vmatpush2.bf16.msra.mxu0 0
      %765 = vmatprep.subr.bf16.mxu0 0
      %766 = vmatpush2.bf16.msra.mxu0 0
      %767 = vmatprep.subr.bf16.mxu0 0
      %768 = vmatpush2.bf16.msra.mxu0 0
      %769 = vmatprep.subr.bf16.mxu0 0
      %770 = vmatpush2.bf16.msra.mxu0 0
      %771 = vmatprep.subr.bf16.mxu0 0
      %772 = vmatpush2.bf16.msra.mxu0 0
      %773 = vmatprep.subr.bf16.mxu0 0
      %774 = vmatpush2.bf16.msra.mxu0 0
      %775 = vmatprep.subr.bf16.mxu0 0
      %776 = vmatpush2.bf16.msra.mxu0 0
      %777 = vmatprep.mubr.bf16.mxu0 0
      %778 = vmatmul.mubr.bf16.gmra.mxu0 %v737
      %v779 = vpop.f32.mrf.mxu0
      %v780 = vadd.f32 0.0, %v779
      %v781 = vpop.f32.mrf.mxu0
      %v782 = vpop.f32.mrf.mxu0
      %v783 = vadd.f32 0.0, %v782
      %v784 = vpop.f32.mrf.mxu0
      %785 = vmatprep.mubr.bf16.mxu0 0
      %786 = vmatmul.mubr.bf16.gmra.mxu0 %v740
      %v787 = vpop.f32.mrf.mxu0
      %v788 = vadd.f32 0.0, %v787
      %v789 = vpop.f32.mrf.mxu0
      %v790 = vpop.f32.mrf.mxu0
      %v791 = vpop.f32.mrf.mxu0
      %792 = vdwg.mxu0
      %v793 = vadd.f32 %v727, %v780
      %v794 = vadd.f32 %v728, %v783
      %v795 = vadd.f32 %v729, %v788
      %v796 = vld [vmem:[%s206] sm:$0x8]
      %s797 = scalar_lea.vmem %s210, 32
      %v798 = vld [vmem:[%s797] sm:$0xf]
      %v800 = vunpack.c.l.b16 %v796
      %v801 = vpack.c.b16 %v647, %v800
      %vm802 = vcmask 1044480
      %v803 = vrot.slane %v801, 3
      %v804 = vrot.slane %v651, 3
      %v805 = vsel %vm802, %v803, %v804
      %v807 = vsel %vm241, %v805, 0
      %v810 = vsel %vm241, %v804, 0
      %v813 = vsel %vm248, %v798, 0
      %815 = vmatprep.subr.bf16.mxu0 0
      %816 = vmatpush1.bf16.msra.mxu0 0
      %817 = vmatprep.subr.bf16.mxu0 0
      %818 = vmatpush1.bf16.msra.mxu0 0
      %819 = vmatprep.subr.bf16.mxu0 0
      %820 = vmatpush1.bf16.msra.mxu0 0
      %821 = vmatprep.subr.bf16.mxu0 0
      %822 = vmatpush1.bf16.msra.mxu0 0
      %823 = vmatprep.subr.bf16.mxu0 0
      %824 = vmatpush1.bf16.msra.mxu0 0
      %825 = vmatprep.subr.bf16.mxu0 0
      %826 = vmatpush1.bf16.msra.mxu0 0
      %827 = vmatprep.subr.bf16.mxu0 0
      %828 = vmatpush1.bf16.msra.mxu0 0
      %829 = vmatprep.subr.bf16.mxu0 0
      %830 = vmatpush1.bf16.msra.mxu0 %v813
      %831 = vmatprep.subr.bf16.mxu0 0
      %832 = vmatpush2.bf16.msra.mxu0 0
      %833 = vmatprep.subr.bf16.mxu0 0
      %834 = vmatpush2.bf16.msra.mxu0 0
      %835 = vmatprep.subr.bf16.mxu0 0
      %836 = vmatpush2.bf16.msra.mxu0 0
      %837 = vmatprep.subr.bf16.mxu0 0
      %838 = vmatpush2.bf16.msra.mxu0 0
      %839 = vmatprep.subr.bf16.mxu0 0
      %840 = vmatpush2.bf16.msra.mxu0 0
      %841 = vmatprep.subr.bf16.mxu0 0
      %842 = vmatpush2.bf16.msra.mxu0 0
      %843 = vmatprep.subr.bf16.mxu0 0
      %844 = vmatpush2.bf16.msra.mxu0 0
      %845 = vmatprep.subr.bf16.mxu0 0
      %846 = vmatpush2.bf16.msra.mxu0 0
      %847 = vmatprep.mubr.bf16.mxu0 0
      %848 = vmatmul.mubr.bf16.gmra.mxu0 %v807
      %v849 = vpop.f32.mrf.mxu0
      %v850 = vadd.f32 0.0, %v849
      %v851 = vpop.f32.mrf.mxu0
      %v852 = vpop.f32.mrf.mxu0
      %v853 = vadd.f32 0.0, %v852
      %v854 = vpop.f32.mrf.mxu0
      %855 = vmatprep.mubr.bf16.mxu0 0
      %856 = vmatmul.mubr.bf16.gmra.mxu0 %v810
      %v857 = vpop.f32.mrf.mxu0
      %v858 = vadd.f32 0.0, %v857
      %v859 = vpop.f32.mrf.mxu0
      %v860 = vpop.f32.mrf.mxu0
      %v861 = vpop.f32.mrf.mxu0
      %862 = vdwg.mxu0
      %v863 = vadd.f32 %v793, %v850
      %v864 = vadd.f32 %v794, %v853
      %v865 = vadd.f32 %v795, %v858
      %v866 = vld [vmem:[%s213] sm:$0x1]
      %v868 = vlaneseq
      %v869 = vshrl.u32 %v868, 7
      %v870 = vsub.s32 0, %v869
      %v871 = vrot.slane %v866, %v870
      %v873 = vadd.f32 %v863, %v871
      %v874 = vadd.f32 %v864, %v871
      %v875 = vadd.f32 %v865, %v871
      %vm876 = vcmp.ge.f32.partialorder %v873, 0.0
      %vm877 = vcmp.ge.f32.partialorder %v874, 0.0
      %vm878 = vcmp.ge.f32.partialorder %v875, 0.0
      %v879 = vmul.f32 %v873, 0.2
      %v880 = vmul.f32 %v874, 0.2
      %v881 = vmul.f32 %v875, 0.2
      %v882 = vsel %vm876, %v873, %v879
      %v883 = vsel %vm877, %v874, %v880
      %v884 = vsel %vm878, %v875, %v881
      %v885 = vpack.c.bf16 %v883, %v882
      %v886 = vpack.c.bf16 %v884, %v884
      %v889 = vunpack.c.l.b16 %v885
      %v890 = vunpack.c.h.b16 %v885
      %v891 = vunpack.c.l.b16 %v886
      %v892 = vpack.c.b16 %v889, %v889
      %v893 = vpack.c.b16 %v890, %v890
      %v894 = vpack.c.b16 %v891, %v891
      %898 = vst [vmem:[%s221] sm:$0xf] %v892
      %899 = vst [vmem:[%s221 + $0x4] sm:$0xf] %v893
      %900 = vst [vmem:[%s221 + $0x8] sm:$0x3] %v894
      %p901 = scmp.lt.s32.totalorder %s18, 1
      %s902 = scalar_select %p901, %s18, 1
      %p903 = scmp.lt.s32.totalorder %s19, 0
      %s904 = scalar_select %p903, %s19, 0
      %s905 = smul.addr %s902, 3
      %s906 = sadd.s32 %s904, %s905
      %s907 = smul.addr %s906, 4
      %s908 = scalar_lea.vmem %s3, %s907
      // Predicated region
      $region33: #{dcgan_discriminator_forward.4} parent=31 // pred_check
        %p909 = pneg %p124
      $region34: #{dcgan_discriminator_forward.4} parent=31 // pred_check_branch
        %911 = sbr.rel (%p909) target = $region36
      $region35: #{dcgan_discriminator_forward.4} parent=31 // pred_region
        _
      $region36: #{dcgan_discriminator_forward.4} parent=31 // pred_fallthru
        _
    $region32: #{dcgan_discriminator_forward.4} parent=5 // pred_fallthru
      _
    %p912 = scmp.le.s32.totalorder 2, %s9
    // Predicated region
    $region37: #{dcgan_discriminator_forward.4} parent=5 // pred_check
      %p913 = pneg %p912
    $region38: #{dcgan_discriminator_forward.4} parent=5 // pred_check_branch
      %915 = sbr.rel (%p913) target = $region40
    $region39: #{dcgan_discriminator_forward.4} parent=5 // pred_region
      %s916 = ssub.s32 %s9, 2
      // Predicated region
      $region41: #{dcgan_discriminator_forward.4} parent=39 // pred_check
        %p917 = pneg %p130
      $region42: #{dcgan_discriminator_forward.4} parent=39 // pred_check_branch
        %919 = sbr.rel (%p917) target = $region44
      $region43: #{dcgan_discriminator_forward.4} parent=39 // pred_region
        %p920 = scmp.lt.s32.totalorder %s20, 1
        %s921 = scalar_select %p920, %s20, 1
        %p922 = scmp.lt.s32.totalorder %s21, 0
        %s923 = scalar_select %p922, %s21, 0
        %s924 = smul.addr %s921, 3
        %s925 = sadd.s32 %s923, %s924
        %s926 = smul.addr %s925, 4
        %s927 = scalar_lea.vmem %s3, %s926
      $region44: #{dcgan_discriminator_forward.4} parent=39 // pred_fallthru
        _
    $region40: #{dcgan_discriminator_forward.4} parent=5 // pred_fallthru
      _
  $region6: #{dcgan_discriminator_forward.4} parent=0 // loop_footer
    %s13 = sadd.s32 1, %s9
  $region7: #{dcgan_discriminator_forward.4} parent=0 // loop_footer_branch
    %8 = sbr.rel target = $region3
  $region8: #{dcgan_discriminator_forward.4} parent=0 // loop_exit
    _

</llo_original>
